<compile_context>
chip_gen: v6e
topology: v6e:2x2x1
jax: 0.10.0
libtpu: 0.0.40
codegen_flags: <defaults>
</compile_context>

<pallas_src>
import functools
import math

import jax
import jax.numpy as jnp
from jax.experimental import pallas as pl
from jax.experimental.pallas import tpu as pltpu


# ---------------------------------------------------------------------------
# small in-kernel helpers
# ---------------------------------------------------------------------------
def _mm(a, b):
    # a @ b with f32 accumulation
    return jax.lax.dot_general(a, b, (((1,), (0,)), ((), ())),
                               preferred_element_type=jnp.float32)


def _mm_t(a, b):
    # a @ b.T without materializing the transpose
    return jax.lax.dot_general(a, b, (((1,), (1,)), ((), ())),
                               preferred_element_type=jnp.float32)


def _erf(x):
    # Abramowitz & Stegun 7.1.26 (|err| < 1.5e-7); uses only exp / mul / add /
    # select, all natively supported by Mosaic.  Matches torch's exact-erf
    # GELU to well below f32 matmul noise.
    p = 0.3275911
    a1, a2, a3, a4, a5 = (0.254829592, -0.284496736, 1.421413741,
                          -1.453152027, 1.061405429)
    ax = jnp.abs(x)
    t = 1.0 / (1.0 + p * ax)
    poly = ((((a5 * t + a4) * t + a3) * t + a2) * t + a1) * t
    y = 1.0 - poly * jnp.exp(-ax * ax)
    return jnp.where(x >= 0.0, y, -y)


def _gelu(x):
    # exact (erf) GELU, matching torch.nn.GELU default
    return 0.5 * x * (1.0 + _erf(x * (1.0 / math.sqrt(2.0))))


# ---------------------------------------------------------------------------
# fused whole-proof kernel (one inner grid step == one proof step)
# ---------------------------------------------------------------------------
def _prover_kernel(
    conj_ref, kax_ref, vax_ref,
    w_proj_ref, b_proj_ref,
    wo_ax_ref, bo_ax_ref, wo_st_ref, bo_st_ref,
    g_w1_ref, g_b1_ref, g_gamma_ref, g_beta_ref, g_w2_ref, g_b2_ref,
    steps_ref,
    state_scr, kmem_scr, vmem_scr,
    *, num_heads, head_dim, max_steps,
):
    t = pl.program_id(1)                       # proof step index (sequential)
    nh, hd = num_heads, head_dim
    H = nh * hd
    S = max_steps
    scale = 1.0 / math.sqrt(hd)

    @pl.when(t == 0)
    def _init():
        state_scr[...] = conj_ref[...]         # start of a (new) batch block

    x = state_scr[...]                         # (bb, H)  == proof_steps[t]
    bb = x.shape[0]

    # ---- ONE fused projection matmul: [q_axiom | q_step | k_step | v_step] --
    proj = _mm(x, w_proj_ref[...]) + b_proj_ref[...]          # (bb, 4H)
    q_ax = proj[:, 0 * H:1 * H]
    q_st = proj[:, 1 * H:2 * H]
    # append this state's step-attention K/V: one contiguous slab store each
    kmem_scr[t] = proj[:, 2 * H:3 * H]
    vmem_scr[t] = proj[:, 3 * H:4 * H]

    # ---- axiom multi-head attention (K/V precomputed once, resident) --------
    k_ax = kax_ref[...]                                       # (A, H)
    v_ax = vax_ref[...]                                       # (A, H)
    ax_heads = []
    for h in range(nh):
        sl = slice(h * hd, (h + 1) * hd)
        s = _mm_t(q_ax[:, sl], k_ax[:, sl]) * scale           # (bb, A)
        m = jnp.max(s, axis=-1, keepdims=True)
        e = jnp.exp(s - m)
        p = e * pl.reciprocal(jnp.sum(e, axis=-1, keepdims=True), approx=True)
        ax_heads.append(_mm(p, v_ax[:, sl]))                  # (bb, hd)
    ax_ctx = ax_heads[0] if nh == 1 else jnp.concatenate(ax_heads, axis=-1)
    ax_out = _mm(ax_ctx, wo_ax_ref[...]) + bo_ax_ref[...]     # single out-proj

    # ---- step attention over cache rows 0..t (rows > t masked, no init) -----
    valid = jax.lax.broadcasted_iota(jnp.int32, (S, bb, 1), 0) <= t
    kmem = kmem_scr[...]                                      # (S, bb, H)
    vmem = jnp.where(valid, vmem_scr[...], 0.0)               # mask garbage V
    st_heads = []
    for h in range(nh):
        sl = slice(h * hd, (h + 1) * hd)
        q_h = q_st[:, sl]                                     # (bb, hd)
        s = jnp.sum(q_h[None] * kmem[:, :, sl], axis=-1,
                    keepdims=True) * scale                    # (S, bb, 1)
        s = jnp.where(valid, s, -1e30)
        m = jnp.max(s, axis=0, keepdims=True)
        e = jnp.exp(s - m)
        p = e * pl.reciprocal(jnp.sum(e, axis=0, keepdims=True), approx=True)
        st_heads.append(jnp.sum(p * vmem[:, :, sl], axis=0))  # (bb, hd)
    st_ctx = st_heads[0] if nh == 1 else jnp.concatenate(st_heads, axis=-1)
    st_out = _mm(st_ctx, wo_st_ref[...]) + bo_st_ref[...]     # single out-proj

    # ---- proof_step_generator: Linear(3H,2H) -> LayerNorm -> GELU -> Linear -
    # (the 3H concat [state | axiom | step] is replaced by three row-blocks)
    h1 = (_mm(x, g_w1_ref[0]) + _mm(ax_out, g_w1_ref[1]) +
          _mm(st_out, g_w1_ref[2]) + g_b1_ref[...])           # (bb, 2H)
    mu = jnp.mean(h1, axis=-1, keepdims=True)
    var = jnp.mean((h1 - mu) ** 2, axis=-1, keepdims=True)
    h1 = (h1 - mu) * jax.lax.rsqrt(var + 1e-5)
    h1 = h1 * g_gamma_ref[...] + g_beta_ref[...]
    h1 = _gelu(h1)
    nxt = _mm(h1, g_w2_ref[...]) + g_b2_ref[...]              # (bb, H)

    # ---- per-step output & carried state ------------------------------------
    steps_ref[0] = nxt.astype(steps_ref.dtype)
    state_scr[...] = nxt


def _resident_spec(arr):
    # full-shape block, constant index map -> stays resident in VMEM
    zeros = (0,) * arr.ndim
    return pl.BlockSpec(arr.shape, lambda b, t, _z=zeros: _z)


# ---------------------------------------------------------------------------
# single fused pallas_call for the whole proof loop (+ post-hoc batched XLA)
# ---------------------------------------------------------------------------
@functools.partial(jax.jit,
                   static_argnames=("num_heads", "max_steps", "batch_block"))
def _run_prover(conjecture, params, *, num_heads, max_steps, batch_block=None):
    B, H = conjecture.shape
    A = params['axiom_embeddings'].shape[0]
    nh = num_heads
    hd = H // nh
    S = max_steps
    f32 = jnp.float32
    tr = jnp.transpose
    row = lambda v: v.reshape(1, -1).astype(f32)

    ax = params['axiom_embeddings'].astype(f32)

    # split torch in_proj (3H, H) / (3H,) into q/k/v chunks
    def split3(w, b):
        return [(w[i * H:(i + 1) * H], b[i * H:(i + 1) * H]) for i in range(3)]

    (wq_ax, bq_ax), (wk_ax, bk_ax), (wv_ax, bv_ax) = split3(
        params['ax_in_w'].astype(f32), params['ax_in_b'].astype(f32))
    (wq_st, bq_st), (wk_st, bk_st), (wv_st, bv_st) = split3(
        params['st_in_w'].astype(f32), params['st_in_b'].astype(f32))

    # axiom keys/values are loop-invariant: projected ONCE here (hoisted out of
    # the serial proof loop) and passed to the kernel as resident inputs.
    k_ax = ax @ wk_ax.T + bk_ax                               # (A, H)
    v_ax = ax @ wv_ax.T + bv_ax                               # (A, H)

    # one fused (H, 4H) projection weight: [q_axiom | q_step | k_step | v_step]
    w_proj = jnp.concatenate([wq_ax.T, wq_st.T, wk_st.T, wv_st.T], axis=1)
    b_proj = jnp.concatenate([bq_ax, bq_st, bk_st, bv_st]).reshape(1, 4 * H)

    wo_ax = tr(params['ax_out_w']).astype(f32)                # ctx @ Wo^T
    wo_st = tr(params['st_out_w']).astype(f32)
    g_w1 = tr(params['g_w1']).astype(f32).reshape(3, H, 2 * H)  # [x|ax|st] rows
    g_w2 = tr(params['g_w2']).astype(f32)

    weight_args = (
        k_ax, v_ax, w_proj, b_proj,
        wo_ax, row(params['ax_out_b']),
        wo_st, row(params['st_out_b']),
        g_w1, row(params['g_b1']), row(params['g_gamma']), row(params['g_beta']),
        g_w2, row(params['g_b2']),
    )

    conj = conjecture.astype(f32)
    bb = B if batch_block is None else batch_block
    assert B % bb == 0 and (bb == B or bb % 8 == 0), "bad batch_block"
    nb = B // bb

    kernel = functools.partial(_prover_kernel, num_heads=nh, head_dim=hd,
                               max_steps=S)

    in_specs = [pl.BlockSpec((bb, H), lambda b, t: (b, 0))]
    in_specs += [_resident_spec(a) for a in weight_args]
    out_spec = pl.BlockSpec((1, bb, H), lambda b, t: (t, b, 0))

    scratch = [
        pltpu.VMEM((bb, H), f32),            # carried proof state
        pltpu.VMEM((S, bb, H), f32),         # step-attention K cache
        pltpu.VMEM((S, bb, H), f32),         # step-attention V cache
    ]

    # explicit VMEM budget (resident weights + out block + scratch + headroom),
    # capped at 64 MiB so the same limit is valid on v5e/v6e/v7x.
    in_bytes = sum(int(a.size) * 4 for a in (conj,) + weight_args)
    scratch_bytes = (bb * H + 2 * S * bb * H) * 4
    need = 2 * in_bytes + 2 * (bb * H * 4) + scratch_bytes + (8 << 20)
    vmem_limit = int(min(max(need, 16 << 20), 64 << 20))

    steps_slab = pl.pallas_call(
        kernel,
        out_shape=jax.ShapeDtypeStruct((S, B, H), f32),
        grid_spec=pltpu.PrefetchScalarGridSpec(
            num_scalar_prefetch=0,
            grid=(nb, S),                    # (parallel batch blocks, steps)
            in_specs=in_specs,
            out_specs=out_spec,
            scratch_shapes=scratch,
        ),
        compiler_params=pltpu.CompilerParams(
            dimension_semantics=("parallel", "arbitrary"),
            vmem_limit_bytes=vmem_limit,
        ),
    )(conj, *weight_args)

    # ---- post-hoc, off the serial critical path (batched XLA) --------------
    # validity scorer over all generated steps at once (identical results;
    # scores depend only on the generated step)
    flat = steps_slab.reshape(S * B, H)
    vh = flat @ tr(params['v_w1']).astype(f32) + params['v_b1'].astype(f32)
    vh = jax.nn.gelu(vh, approximate=False)
    scores = jax.nn.sigmoid(vh @ tr(params['v_w2']).astype(f32)
                            + params['v_b2'].astype(f32))
    scores_slab = scores.reshape(S, B, 1)

    # axiom attention weights (head-averaged, as nn.MultiheadAttention returns)
    # recomputed from the input state of every step: proof_steps[t]
    states = jnp.concatenate([conj[None], steps_slab[:-1]], axis=0)   # (S,B,H)
    q = (states @ wq_ax.T + bq_ax).reshape(S, B, nh, hd)
    k_h = k_ax.reshape(A, nh, hd)
    logits = jnp.einsum('sbnd,and->sbna', q, k_h) / math.sqrt(hd)
    axw_slab = jnp.mean(jax.nn.softmax(logits, axis=-1), axis=2)      # (S,B,A)

    return steps_slab, scores_slab, axw_slab


# ---------------------------------------------------------------------------
# full forward pass (eval mode), mirroring TheoremProver.forward
# ---------------------------------------------------------------------------
def theorem_prover_forward(conjecture, params, *, num_heads, max_steps,
                           batch_block=None):
    B = conjecture.shape[0]
    # TODO(synk): the reference also runs a 2-layer LSTM (proof_memory) every
    # step, but its output never feeds any returned value; omitted.
    # TODO(synk): for very large max_steps, run the proof in chunks of grid
    # steps and check the early-stop between chunks instead of computing all.
    steps_slab, scores_slab, axw_slab = _run_prover(
        conjecture, params, num_heads=num_heads, max_steps=max_steps,
        batch_block=batch_block)
    A = axw_slab.shape[-1]

    # Single device->host sync reproduces the eval-mode early stop: steps
    # computed past the stop point are simply discarded (identical results
    # for the steps that are returned).
    means = jax.device_get(scores_slab).mean(axis=(1, 2))             # (S,)
    n_steps = max_steps
    for s in range(max_steps):
        if means[s] > 0.95:
            n_steps = s + 1
            break

    proof_steps = [conjecture] + [steps_slab[s] for s in range(n_steps)]
    proof_trace = {'attention_weights': [], 'axiom_usage': [], 'step_scores': []}
    for s in range(n_steps):
        axw = axw_slab[s].reshape(B, 1, A)       # (B, 1, A) like nn.MultiheadAttention
        proof_trace['attention_weights'].append(axw)
        proof_trace['axiom_usage'].append(jnp.argmax(axw, axis=-1))
        proof_trace['step_scores'].append(scores_slab[s])
    # validity_scorer(proof_steps[-1]) == last executed step's score
    validity_score = scores_slab[n_steps - 1]
    return proof_steps, validity_score, proof_trace


# ---------------------------------------------------------------------------
# deterministic parameter construction (shapes follow the PyTorch __init__)
# ---------------------------------------------------------------------------
def init_params(key, hidden, num_axioms):
    H = hidden
    ks = jax.random.split(key, 16)
    rn = lambda k, shape, s=1.0: jax.random.normal(k, shape, jnp.float32) * s
    s = 1.0 / math.sqrt(H)
    return dict(
        axiom_embeddings=rn(ks[0], (num_axioms, H)),          # torch.randn
        ax_in_w=rn(ks[1], (3 * H, H), s), ax_in_b=rn(ks[2], (3 * H,), 0.02),
        ax_out_w=rn(ks[3], (H, H), s),    ax_out_b=rn(ks[4], (H,), 0.02),
        st_in_w=rn(ks[5], (3 * H, H), s), st_in_b=rn(ks[6], (3 * H,), 0.02),
        st_out_w=rn(ks[7], (H, H), s),    st_out_b=rn(ks[8], (H,), 0.02),
        g_w1=rn(ks[9], (2 * H, 3 * H), 1.0 / math.sqrt(3 * H)),
        g_b1=rn(ks[10], (2 * H,), 0.02),
        g_gamma=jnp.ones((2 * H,), jnp.float32),
        g_beta=jnp.zeros((2 * H,), jnp.float32),
        g_w2=rn(ks[11], (H, 2 * H), 1.0 / math.sqrt(2 * H)),
        g_b2=rn(ks[12], (H,), 0.02),
        v_w1=rn(ks[13], (H, H), s), v_b1=rn(ks[14], (H,), 0.02),
        v_w2=rn(ks[15], (1, H), s), v_b2=jnp.zeros((1,), jnp.float32),
    )


if __name__ == "__main__":
    # small config: hidden_size=32, num_axioms=16, num_attention_heads=4
    # (the module uses num_attention_heads // 2 = 2 heads in both MHAs),
    # max_proof_steps=3, batch=2.
    B, H, A, NUM_ATTN_HEADS, MAX_STEPS = 2, 32, 16, 4, 3
    key = jax.random.PRNGKey(0)
    k_par, k_x = jax.random.split(key)
    params = init_params(k_par, H, A)
    conjecture = jax.random.normal(k_x, (B, H), dtype=jnp.float32)

    proof_steps, validity_score, proof_trace = theorem_prover_forward(
        conjecture, params, num_heads=NUM_ATTN_HEADS // 2, max_steps=MAX_STEPS)

    jax.block_until_ready(proof_steps[-1])
    jax.block_until_ready(validity_score)
    for sc in proof_trace['step_scores']:
        jax.block_until_ready(sc)
    print("KERNEL_OK")
</pallas_src>

<mosaic_0001>
module attributes {stable_mosaic.version = 11 : i64} {
  func.func @_prover_kernel(%arg0: i32, %arg1: i32, %arg2: memref<2x32xf32, #tpu.memory_space<vmem>>, %arg3: memref<16x32xf32, #tpu.memory_space<vmem>>, %arg4: memref<16x32xf32, #tpu.memory_space<vmem>>, %arg5: memref<32x128xf32, #tpu.memory_space<vmem>>, %arg6: memref<1x128xf32, #tpu.memory_space<vmem>>, %arg7: memref<32x32xf32, #tpu.memory_space<vmem>>, %arg8: memref<1x32xf32, #tpu.memory_space<vmem>>, %arg9: memref<32x32xf32, #tpu.memory_space<vmem>>, %arg10: memref<1x32xf32, #tpu.memory_space<vmem>>, %arg11: memref<3x32x64xf32, #tpu.memory_space<vmem>>, %arg12: memref<1x64xf32, #tpu.memory_space<vmem>>, %arg13: memref<1x64xf32, #tpu.memory_space<vmem>>, %arg14: memref<1x64xf32, #tpu.memory_space<vmem>>, %arg15: memref<64x32xf32, #tpu.memory_space<vmem>>, %arg16: memref<1x32xf32, #tpu.memory_space<vmem>>, %arg17: memref<1x2x32xf32, #tpu.memory_space<vmem>>, %arg18: memref<2x32xf32, #tpu.memory_space<vmem>>, %arg19: memref<3x2x32xf32, #tpu.memory_space<vmem>>, %arg20: memref<3x2x32xf32, #tpu.memory_space<vmem>>) attributes {dimension_semantics = [#tpu.dimension_semantics<parallel>, #tpu.dimension_semantics<arbitrary>], iteration_bounds = array<i64: 1, 3>, scalar_prefetch = 0 : i64, scratch_operands = 3 : i64, tpu.core_type = #tpu.core_type<tc>, window_params = [{transform_indices = @transform_0, window_bounds = array<i64: 2, 32>}, {pipeline_mode = #tpu.pipeline_mode<synchronous>, transform_indices = @transform_1, window_bounds = array<i64: 16, 32>}, {pipeline_mode = #tpu.pipeline_mode<synchronous>, transform_indices = @transform_2, window_bounds = array<i64: 16, 32>}, {pipeline_mode = #tpu.pipeline_mode<synchronous>, transform_indices = @transform_3, window_bounds = array<i64: 32, 128>}, {pipeline_mode = #tpu.pipeline_mode<synchronous>, transform_indices = @transform_4, window_bounds = array<i64: 1, 128>}, {pipeline_mode = #tpu.pipeline_mode<synchronous>, transform_indices = @transform_5, window_bounds = array<i64: 32, 32>}, {pipeline_mode = #tpu.pipeline_mode<synchronous>, transform_indices = @transform_6, window_bounds = array<i64: 1, 32>}, {pipeline_mode = #tpu.pipeline_mode<synchronous>, transform_indices = @transform_7, window_bounds = array<i64: 32, 32>}, {pipeline_mode = #tpu.pipeline_mode<synchronous>, transform_indices = @transform_8, window_bounds = array<i64: 1, 32>}, {pipeline_mode = #tpu.pipeline_mode<synchronous>, transform_indices = @transform_9, window_bounds = array<i64: 3, 32, 64>}, {pipeline_mode = #tpu.pipeline_mode<synchronous>, transform_indices = @transform_10, window_bounds = array<i64: 1, 64>}, {pipeline_mode = #tpu.pipeline_mode<synchronous>, transform_indices = @transform_11, window_bounds = array<i64: 1, 64>}, {pipeline_mode = #tpu.pipeline_mode<synchronous>, transform_indices = @transform_12, window_bounds = array<i64: 1, 64>}, {pipeline_mode = #tpu.pipeline_mode<synchronous>, transform_indices = @transform_13, window_bounds = array<i64: 64, 32>}, {pipeline_mode = #tpu.pipeline_mode<synchronous>, transform_indices = @transform_14, window_bounds = array<i64: 1, 32>}, {transform_indices = @transform_15, window_bounds = array<i64: 1, 2, 32>}]} {
    %c0_i32 = arith.constant 0 : i32
    %0 = arith.cmpi eq, %arg1, %c0_i32 : i32
    %1 = arith.extui %0 : i1 to i32
    %c0_i32_0 = arith.constant 0 : i32
    %2 = arith.cmpi ne, %1, %c0_i32_0 : i32
    scf.if %2 {
      %c0_99 = arith.constant 0 : index
      %c0_100 = arith.constant 0 : index
      %215 = vector.load %arg2[%c0_99, %c0_100] : memref<2x32xf32, #tpu.memory_space<vmem>>, vector<2x32xf32>
      %c0_101 = arith.constant 0 : index
      %c0_102 = arith.constant 0 : index
      %216 = vector.load %arg18[%c0_101, %c0_102] : memref<2x32xf32, #tpu.memory_space<vmem>>, vector<2x32xf32>
      tpu.vector_store %arg18[%c0_101, %c0_102], %215 {strides = array<i32>} : memref<2x32xf32, #tpu.memory_space<vmem>>, vector<2x32xf32>,
    } else {
    }
    %c0 = arith.constant 0 : index
    %c0_1 = arith.constant 0 : index
    %3 = vector.load %arg18[%c0, %c0_1] : memref<2x32xf32, #tpu.memory_space<vmem>>, vector<2x32xf32>
    %c0_2 = arith.constant 0 : index
    %c0_3 = arith.constant 0 : index
    %4 = vector.load %arg5[%c0_2, %c0_3] : memref<32x128xf32, #tpu.memory_space<vmem>>, vector<32x128xf32>
    %cst = arith.constant dense<0.000000e+00> : vector<2x128xf32>
    %5 = tpu.matmul %3, %4, %cst {dimension_numbers = #tpu.dot_dimension_numbers<[1], [0], [0], [1], [0, 0, 1, 1], [], []>} : vector<2x32xf32>, vector<32x128xf32>, vector<2x128xf32> -> vector<2x128xf32>
    %c0_4 = arith.constant 0 : index
    %c0_5 = arith.constant 0 : index
    %6 = vector.load %arg6[%c0_4, %c0_5] : memref<1x128xf32, #tpu.memory_space<vmem>>, vector<1x128xf32>
    %7 = vector.broadcast %6 : vector<1x128xf32> to vector<2x128xf32>
    %8 = arith.addf %5, %7 : vector<2x128xf32>
    %9 = vector.extract_strided_slice %8 {offsets = [0, 0], sizes = [2, 32], strides = [1, 1]} : vector<2x128xf32> to vector<2x32xf32>
    %10 = vector.extract_strided_slice %8 {offsets = [0, 32], sizes = [2, 32], strides = [1, 1]} : vector<2x128xf32> to vector<2x32xf32>
    %11 = vector.extract_strided_slice %8 {offsets = [0, 64], sizes = [2, 32], strides = [1, 1]} : vector<2x128xf32> to vector<2x32xf32>
    %12 = arith.index_cast %arg1 : i32 to index
    %c0_6 = arith.constant 0 : index
    %c0_7 = arith.constant 0 : index
    %13 = vector.load %arg19[%12, %c0_6, %c0_7] : memref<3x2x32xf32, #tpu.memory_space<vmem>>, vector<1x2x32xf32>
    %14 = vector.shape_cast %13 : vector<1x2x32xf32> to vector<2x32xf32>
    %15 = vector.shape_cast %11 : vector<2x32xf32> to vector<1x2x32xf32>
    tpu.vector_store %arg19[%12, %c0_6, %c0_7], %15 {strides = array<i32>} : memref<3x2x32xf32, #tpu.memory_space<vmem>>, vector<1x2x32xf32>,
    %16 = vector.extract_strided_slice %8 {offsets = [0, 96], sizes = [2, 32], strides = [1, 1]} : vector<2x128xf32> to vector<2x32xf32>
    %17 = arith.index_cast %arg1 : i32 to index
    %c0_8 = arith.constant 0 : index
    %c0_9 = arith.constant 0 : index
    %18 = vector.load %arg20[%17, %c0_8, %c0_9] : memref<3x2x32xf32, #tpu.memory_space<vmem>>, vector<1x2x32xf32>
    %19 = vector.shape_cast %18 : vector<1x2x32xf32> to vector<2x32xf32>
    %20 = vector.shape_cast %16 : vector<2x32xf32> to vector<1x2x32xf32>
    tpu.vector_store %arg20[%17, %c0_8, %c0_9], %20 {strides = array<i32>} : memref<3x2x32xf32, #tpu.memory_space<vmem>>, vector<1x2x32xf32>,
    %c0_10 = arith.constant 0 : index
    %c0_11 = arith.constant 0 : index
    %21 = vector.load %arg3[%c0_10, %c0_11] : memref<16x32xf32, #tpu.memory_space<vmem>>, vector<16x32xf32>
    %c0_12 = arith.constant 0 : index
    %c0_13 = arith.constant 0 : index
    %22 = vector.load %arg4[%c0_12, %c0_13] : memref<16x32xf32, #tpu.memory_space<vmem>>, vector<16x32xf32>
    %23 = vector.extract_strided_slice %9 {offsets = [0, 0], sizes = [2, 16], strides = [1, 1]} : vector<2x32xf32> to vector<2x16xf32>
    %24 = vector.extract_strided_slice %21 {offsets = [0, 0], sizes = [16, 16], strides = [1, 1]} : vector<16x32xf32> to vector<16x16xf32>
    %cst_14 = arith.constant dense<0.000000e+00> : vector<2x16xf32>
    %25 = tpu.matmul %23, %24, %cst_14 {dimension_numbers = #tpu.dot_dimension_numbers<[1], [1], [0], [0], [0, 0, 1, 0], [], []>} : vector<2x16xf32>, vector<16x16xf32>, vector<2x16xf32> -> vector<2x16xf32>
    %cst_15 = arith.constant 2.500000e-01 : f32
    %26 = vector.broadcast %cst_15 : f32 to vector<2x16xf32>
    %27 = arith.mulf %25, %26 : vector<2x16xf32>
    %cst_16 = arith.constant dense<0xFF800000> : vector<2xf32>
    %28 = vector.multi_reduction <maximumf>, %27, %cst_16 [1] : vector<2x16xf32> to vector<2xf32>
    %29 = vector.shape_cast %28 : vector<2xf32> to vector<2x1xf32>
    %30 = vector.broadcast %29 : vector<2x1xf32> to vector<2x16xf32>
    %31 = arith.subf %27, %30 : vector<2x16xf32>
    %32 = math.exp %31 : vector<2x16xf32>
    %cst_17 = arith.constant dense<0.000000e+00> : vector<2xf32>
    %33 = vector.multi_reduction <add>, %32, %cst_17 [1] : vector<2x16xf32> to vector<2xf32>
    %34 = vector.shape_cast %33 : vector<2xf32> to vector<2x1xf32>
    %35 = tpu.reciprocal %34 {approx = true} : vector<2x1xf32> -> vector<2x1xf32>
    %36 = vector.broadcast %35 : vector<2x1xf32> to vector<2x16xf32>
    %37 = arith.mulf %32, %36 : vector<2x16xf32>
    %38 = vector.extract_strided_slice %22 {offsets = [0, 0], sizes = [16, 16], strides = [1, 1]} : vector<16x32xf32> to vector<16x16xf32>
    %cst_18 = arith.constant dense<0.000000e+00> : vector<2x16xf32>
    %39 = tpu.matmul %37, %38, %cst_18 {dimension_numbers = #tpu.dot_dimension_numbers<[1], [0], [0], [1], [0, 0, 1, 1], [], []>} : vector<2x16xf32>, vector<16x16xf32>, vector<2x16xf32> -> vector<2x16xf32>
    %40 = vector.extract_strided_slice %9 {offsets = [0, 16], sizes = [2, 16], strides = [1, 1]} : vector<2x32xf32> to vector<2x16xf32>
    %41 = vector.extract_strided_slice %21 {offsets = [0, 16], sizes = [16, 16], strides = [1, 1]} : vector<16x32xf32> to vector<16x16xf32>
    %cst_19 = arith.constant dense<0.000000e+00> : vector<2x16xf32>
    %42 = tpu.matmul %40, %41, %cst_19 {dimension_numbers = #tpu.dot_dimension_numbers<[1], [1], [0], [0], [0, 0, 1, 0], [], []>} : vector<2x16xf32>, vector<16x16xf32>, vector<2x16xf32> -> vector<2x16xf32>
    %cst_20 = arith.constant 2.500000e-01 : f32
    %43 = vector.broadcast %cst_20 : f32 to vector<2x16xf32>
    %44 = arith.mulf %42, %43 : vector<2x16xf32>
    %cst_21 = arith.constant dense<0xFF800000> : vector<2xf32>
    %45 = vector.multi_reduction <maximumf>, %44, %cst_21 [1] : vector<2x16xf32> to vector<2xf32>
    %46 = vector.shape_cast %45 : vector<2xf32> to vector<2x1xf32>
    %47 = vector.broadcast %46 : vector<2x1xf32> to vector<2x16xf32>
    %48 = arith.subf %44, %47 : vector<2x16xf32>
    %49 = math.exp %48 : vector<2x16xf32>
    %cst_22 = arith.constant dense<0.000000e+00> : vector<2xf32>
    %50 = vector.multi_reduction <add>, %49, %cst_22 [1] : vector<2x16xf32> to vector<2xf32>
    %51 = vector.shape_cast %50 : vector<2xf32> to vector<2x1xf32>
    %52 = tpu.reciprocal %51 {approx = true} : vector<2x1xf32> -> vector<2x1xf32>
    %53 = vector.broadcast %52 : vector<2x1xf32> to vector<2x16xf32>
    %54 = arith.mulf %49, %53 : vector<2x16xf32>
    %55 = vector.extract_strided_slice %22 {offsets = [0, 16], sizes = [16, 16], strides = [1, 1]} : vector<16x32xf32> to vector<16x16xf32>
    %cst_23 = arith.constant dense<0.000000e+00> : vector<2x16xf32>
    %56 = tpu.matmul %54, %55, %cst_23 {dimension_numbers = #tpu.dot_dimension_numbers<[1], [0], [0], [1], [0, 0, 1, 1], [], []>} : vector<2x16xf32>, vector<16x16xf32>, vector<2x16xf32> -> vector<2x16xf32>
    %57 = tpu.concatenate %39, %56 in 1 : vector<2x16xf32>, vector<2x16xf32> -> vector<2x32xf32>
    %c0_24 = arith.constant 0 : index
    %c0_25 = arith.constant 0 : index
    %58 = vector.load %arg7[%c0_24, %c0_25] : memref<32x32xf32, #tpu.memory_space<vmem>>, vector<32x32xf32>
    %cst_26 = arith.constant dense<0.000000e+00> : vector<2x32xf32>
    %59 = tpu.matmul %57, %58, %cst_26 {dimension_numbers = #tpu.dot_dimension_numbers<[1], [0], [0], [1], [0, 0, 1, 1], [], []>} : vector<2x32xf32>, vector<32x32xf32>, vector<2x32xf32> -> vector<2x32xf32>
    %c0_27 = arith.constant 0 : index
    %c0_28 = arith.constant 0 : index
    %60 = vector.load %arg8[%c0_27, %c0_28] : memref<1x32xf32, #tpu.memory_space<vmem>>, vector<1x32xf32>
    %61 = vector.broadcast %60 : vector<1x32xf32> to vector<2x32xf32>
    %62 = arith.addf %59, %61 : vector<2x32xf32>
    %63 = tpu.iota {dimensions = array<i32: 0>} : vector<3x2x1xi32>
    %64 = vector.broadcast %arg1 : i32 to vector<3x2x1xi32>
    %65 = arith.cmpi sle, %63, %64 : vector<3x2x1xi32>
    %c0_29 = arith.constant 0 : index
    %c0_30 = arith.constant 0 : index
    %c0_31 = arith.constant 0 : index
    %66 = vector.load %arg19[%c0_29, %c0_30, %c0_31] : memref<3x2x32xf32, #tpu.memory_space<vmem>>, vector<3x2x32xf32>
    %c0_32 = arith.constant 0 : index
    %c0_33 = arith.constant 0 : index
    %c0_34 = arith.constant 0 : index
    %67 = vector.load %arg20[%c0_32, %c0_33, %c0_34] : memref<3x2x32xf32, #tpu.memory_space<vmem>>, vector<3x2x32xf32>
    %cst_35 = arith.constant 0.000000e+00 : f32
    %68 = vector.shape_cast %65 : vector<3x2x1xi1> to vector<3x2x1xi1>
    %69 = vector.broadcast %68 : vector<3x2x1xi1> to vector<3x2x32xi1>
    %70 = vector.broadcast %cst_35 : f32 to vector<3x2x32xf32>
    %71 = arith.select %69, %67, %70 : vector<3x2x32xi1>, vector<3x2x32xf32>
    %72 = vector.extract_strided_slice %10 {offsets = [0, 0], sizes = [2, 16], strides = [1, 1]} : vector<2x32xf32> to vector<2x16xf32>
    %73 = vector.shape_cast %72 : vector<2x16xf32> to vector<1x2x16xf32>
    %74 = vector.extract_strided_slice %66 {offsets = [0, 0, 0], sizes = [3, 2, 16], strides = [1, 1, 1]} : vector<3x2x32xf32> to vector<3x2x16xf32>
    %75 = vector.broadcast %73 : vector<1x2x16xf32> to vector<3x2x16xf32>
    %76 = arith.mulf %75, %74 : vector<3x2x16xf32>
    %cst_36 = arith.constant dense<0.000000e+00> : vector<3x2xf32>
    %77 = vector.multi_reduction <add>, %76, %cst_36 [2] : vector<3x2x16xf32> to vector<3x2xf32>
    %78 = vector.shape_cast %77 : vector<3x2xf32> to vector<3x2x1xf32>
    %cst_37 = arith.constant 2.500000e-01 : f32
    %79 = vector.broadcast %cst_37 : f32 to vector<3x2x1xf32>
    %80 = arith.mulf %78, %79 : vector<3x2x1xf32>
    %cst_38 = arith.constant -1.000000e+30 : f32
    %81 = vector.broadcast %cst_38 : f32 to vector<3x2x1xf32>
    %82 = arith.select %65, %80, %81 : vector<3x2x1xi1>, vector<3x2x1xf32>
    %cst_39 = arith.constant dense<0xFF800000> : vector<2x1xf32>
    %83 = vector.multi_reduction <maximumf>, %82, %cst_39 [0] : vector<3x2x1xf32> to vector<2x1xf32>
    %84 = vector.shape_cast %83 : vector<2x1xf32> to vector<1x2x1xf32>
    %85 = vector.broadcast %84 : vector<1x2x1xf32> to vector<3x2x1xf32>
    %86 = arith.subf %82, %85 : vector<3x2x1xf32>
    %87 = math.exp %86 : vector<3x2x1xf32>
    %cst_40 = arith.constant dense<0.000000e+00> : vector<2x1xf32>
    %88 = vector.multi_reduction <add>, %87, %cst_40 [0] : vector<3x2x1xf32> to vector<2x1xf32>
    %89 = vector.shape_cast %88 : vector<2x1xf32> to vector<1x2x1xf32>
    %90 = tpu.reciprocal %89 {approx = true} : vector<1x2x1xf32> -> vector<1x2x1xf32>
    %91 = vector.broadcast %90 : vector<1x2x1xf32> to vector<3x2x1xf32>
    %92 = arith.mulf %87, %91 : vector<3x2x1xf32>
    %93 = vector.extract_strided_slice %71 {offsets = [0, 0, 0], sizes = [3, 2, 16], strides = [1, 1, 1]} : vector<3x2x32xf32> to vector<3x2x16xf32>
    %94 = vector.broadcast %92 : vector<3x2x1xf32> to vector<3x2x16xf32>
    %95 = arith.mulf %94, %93 : vector<3x2x16xf32>
    %cst_41 = arith.constant dense<0.000000e+00> : vector<2x16xf32>
    %96 = vector.multi_reduction <add>, %95, %cst_41 [0] : vector<3x2x16xf32> to vector<2x16xf32>
    %97 = vector.extract_strided_slice %10 {offsets = [0, 16], sizes = [2, 16], strides = [1, 1]} : vector<2x32xf32> to vector<2x16xf32>
    %98 = vector.shape_cast %97 : vector<2x16xf32> to vector<1x2x16xf32>
    %99 = vector.extract_strided_slice %66 {offsets = [0, 0, 16], sizes = [3, 2, 16], strides = [1, 1, 1]} : vector<3x2x32xf32> to vector<3x2x16xf32>
    %100 = vector.broadcast %98 : vector<1x2x16xf32> to vector<3x2x16xf32>
    %101 = arith.mulf %100, %99 : vector<3x2x16xf32>
    %cst_42 = arith.constant dense<0.000000e+00> : vector<3x2xf32>
    %102 = vector.multi_reduction <add>, %101, %cst_42 [2] : vector<3x2x16xf32> to vector<3x2xf32>
    %103 = vector.shape_cast %102 : vector<3x2xf32> to vector<3x2x1xf32>
    %cst_43 = arith.constant 2.500000e-01 : f32
    %104 = vector.broadcast %cst_43 : f32 to vector<3x2x1xf32>
    %105 = arith.mulf %103, %104 : vector<3x2x1xf32>
    %cst_44 = arith.constant -1.000000e+30 : f32
    %106 = vector.broadcast %cst_44 : f32 to vector<3x2x1xf32>
    %107 = arith.select %65, %105, %106 : vector<3x2x1xi1>, vector<3x2x1xf32>
    %cst_45 = arith.constant dense<0xFF800000> : vector<2x1xf32>
    %108 = vector.multi_reduction <maximumf>, %107, %cst_45 [0] : vector<3x2x1xf32> to vector<2x1xf32>
    %109 = vector.shape_cast %108 : vector<2x1xf32> to vector<1x2x1xf32>
    %110 = vector.broadcast %109 : vector<1x2x1xf32> to vector<3x2x1xf32>
    %111 = arith.subf %107, %110 : vector<3x2x1xf32>
    %112 = math.exp %111 : vector<3x2x1xf32>
    %cst_46 = arith.constant dense<0.000000e+00> : vector<2x1xf32>
    %113 = vector.multi_reduction <add>, %112, %cst_46 [0] : vector<3x2x1xf32> to vector<2x1xf32>
    %114 = vector.shape_cast %113 : vector<2x1xf32> to vector<1x2x1xf32>
    %115 = tpu.reciprocal %114 {approx = true} : vector<1x2x1xf32> -> vector<1x2x1xf32>
    %116 = vector.broadcast %115 : vector<1x2x1xf32> to vector<3x2x1xf32>
    %117 = arith.mulf %112, %116 : vector<3x2x1xf32>
    %118 = vector.extract_strided_slice %71 {offsets = [0, 0, 16], sizes = [3, 2, 16], strides = [1, 1, 1]} : vector<3x2x32xf32> to vector<3x2x16xf32>
    %119 = vector.broadcast %117 : vector<3x2x1xf32> to vector<3x2x16xf32>
    %120 = arith.mulf %119, %118 : vector<3x2x16xf32>
    %cst_47 = arith.constant dense<0.000000e+00> : vector<2x16xf32>
    %121 = vector.multi_reduction <add>, %120, %cst_47 [0] : vector<3x2x16xf32> to vector<2x16xf32>
    %122 = tpu.concatenate %96, %121 in 1 : vector<2x16xf32>, vector<2x16xf32> -> vector<2x32xf32>
    %c0_48 = arith.constant 0 : index
    %c0_49 = arith.constant 0 : index
    %123 = vector.load %arg9[%c0_48, %c0_49] : memref<32x32xf32, #tpu.memory_space<vmem>>, vector<32x32xf32>
    %cst_50 = arith.constant dense<0.000000e+00> : vector<2x32xf32>
    %124 = tpu.matmul %122, %123, %cst_50 {dimension_numbers = #tpu.dot_dimension_numbers<[1], [0], [0], [1], [0, 0, 1, 1], [], []>} : vector<2x32xf32>, vector<32x32xf32>, vector<2x32xf32> -> vector<2x32xf32>
    %c0_51 = arith.constant 0 : index
    %c0_52 = arith.constant 0 : index
    %125 = vector.load %arg10[%c0_51, %c0_52] : memref<1x32xf32, #tpu.memory_space<vmem>>, vector<1x32xf32>
    %126 = vector.broadcast %125 : vector<1x32xf32> to vector<2x32xf32>
    %127 = arith.addf %124, %126 : vector<2x32xf32>
    %c0_53 = arith.constant 0 : index
    %c0_54 = arith.constant 0 : index
    %c0_55 = arith.constant 0 : index
    %128 = vector.load %arg11[%c0_53, %c0_54, %c0_55] : memref<3x32x64xf32, #tpu.memory_space<vmem>>, vector<1x32x64xf32>
    %129 = vector.shape_cast %128 : vector<1x32x64xf32> to vector<32x64xf32>
    %cst_56 = arith.constant dense<0.000000e+00> : vector<2x64xf32>
    %130 = tpu.matmul %3, %129, %cst_56 {dimension_numbers = #tpu.dot_dimension_numbers<[1], [0], [0], [1], [0, 0, 1, 1], [], []>} : vector<2x32xf32>, vector<32x64xf32>, vector<2x64xf32> -> vector<2x64xf32>
    %c1 = arith.constant 1 : index
    %c0_57 = arith.constant 0 : index
    %c0_58 = arith.constant 0 : index
    %131 = vector.load %arg11[%c1, %c0_57, %c0_58] : memref<3x32x64xf32, #tpu.memory_space<vmem>>, vector<1x32x64xf32>
    %132 = vector.shape_cast %131 : vector<1x32x64xf32> to vector<32x64xf32>
    %cst_59 = arith.constant dense<0.000000e+00> : vector<2x64xf32>
    %133 = tpu.matmul %62, %132, %cst_59 {dimension_numbers = #tpu.dot_dimension_numbers<[1], [0], [0], [1], [0, 0, 1, 1], [], []>} : vector<2x32xf32>, vector<32x64xf32>, vector<2x64xf32> -> vector<2x64xf32>
    %134 = arith.addf %130, %133 : vector<2x64xf32>
    %c2 = arith.constant 2 : index
    %c0_60 = arith.constant 0 : index
    %c0_61 = arith.constant 0 : index
    %135 = vector.load %arg11[%c2, %c0_60, %c0_61] : memref<3x32x64xf32, #tpu.memory_space<vmem>>, vector<1x32x64xf32>
    %136 = vector.shape_cast %135 : vector<1x32x64xf32> to vector<32x64xf32>
    %cst_62 = arith.constant dense<0.000000e+00> : vector<2x64xf32>
    %137 = tpu.matmul %127, %136, %cst_62 {dimension_numbers = #tpu.dot_dimension_numbers<[1], [0], [0], [1], [0, 0, 1, 1], [], []>} : vector<2x32xf32>, vector<32x64xf32>, vector<2x64xf32> -> vector<2x64xf32>
    %138 = arith.addf %134, %137 : vector<2x64xf32>
    %c0_63 = arith.constant 0 : index
    %c0_64 = arith.constant 0 : index
    %139 = vector.load %arg12[%c0_63, %c0_64] : memref<1x64xf32, #tpu.memory_space<vmem>>, vector<1x64xf32>
    %140 = vector.broadcast %139 : vector<1x64xf32> to vector<2x64xf32>
    %141 = arith.addf %138, %140 : vector<2x64xf32>
    %cst_65 = arith.constant dense<0.000000e+00> : vector<2xf32>
    %142 = vector.multi_reduction <add>, %141, %cst_65 [1] : vector<2x64xf32> to vector<2xf32>
    %143 = vector.shape_cast %142 : vector<2xf32> to vector<2x1xf32>
    %cst_66 = arith.constant 6.400000e+01 : f32
    %144 = vector.broadcast %cst_66 : f32 to vector<2x1xf32>
    %145 = arith.divf %143, %144 : vector<2x1xf32>
    %146 = vector.broadcast %145 : vector<2x1xf32> to vector<2x64xf32>
    %147 = arith.subf %141, %146 : vector<2x64xf32>
    %148 = arith.mulf %147, %147 : vector<2x64xf32>
    %cst_67 = arith.constant dense<0.000000e+00> : vector<2xf32>
    %149 = vector.multi_reduction <add>, %148, %cst_67 [1] : vector<2x64xf32> to vector<2xf32>
    %150 = vector.shape_cast %149 : vector<2xf32> to vector<2x1xf32>
    %cst_68 = arith.constant 6.400000e+01 : f32
    %151 = vector.broadcast %cst_68 : f32 to vector<2x1xf32>
    %152 = arith.divf %150, %151 : vector<2x1xf32>
    %153 = vector.broadcast %145 : vector<2x1xf32> to vector<2x64xf32>
    %154 = arith.subf %141, %153 : vector<2x64xf32>
    %cst_69 = arith.constant 9.99999974E-6 : f32
    %155 = vector.broadcast %cst_69 : f32 to vector<2x1xf32>
    %156 = arith.addf %152, %155 : vector<2x1xf32>
    %157 = math.rsqrt %156 : vector<2x1xf32>
    %158 = vector.broadcast %157 : vector<2x1xf32> to vector<2x64xf32>
    %159 = arith.mulf %154, %158 : vector<2x64xf32>
    %c0_70 = arith.constant 0 : index
    %c0_71 = arith.constant 0 : index
    %160 = vector.load %arg13[%c0_70, %c0_71] : memref<1x64xf32, #tpu.memory_space<vmem>>, vector<1x64xf32>
    %161 = vector.broadcast %160 : vector<1x64xf32> to vector<2x64xf32>
    %162 = arith.mulf %159, %161 : vector<2x64xf32>
    %c0_72 = arith.constant 0 : index
    %c0_73 = arith.constant 0 : index
    %163 = vector.load %arg14[%c0_72, %c0_73] : memref<1x64xf32, #tpu.memory_space<vmem>>, vector<1x64xf32>
    %164 = vector.broadcast %163 : vector<1x64xf32> to vector<2x64xf32>
    %165 = arith.addf %162, %164 : vector<2x64xf32>
    %cst_74 = arith.constant 5.000000e-01 : f32
    %166 = vector.broadcast %cst_74 : f32 to vector<2x64xf32>
    %167 = arith.mulf %166, %165 : vector<2x64xf32>
    %cst_75 = arith.constant 0.707106769 : f32
    %168 = vector.broadcast %cst_75 : f32 to vector<2x64xf32>
    %169 = arith.mulf %165, %168 : vector<2x64xf32>
    %170 = math.absf %169 : vector<2x64xf32>
    %cst_76 = arith.constant 0.327591091 : f32
    %171 = vector.broadcast %cst_76 : f32 to vector<2x64xf32>
    %172 = arith.mulf %171, %170 : vector<2x64xf32>
    %cst_77 = arith.constant 1.000000e+00 : f32
    %173 = vector.broadcast %cst_77 : f32 to vector<2x64xf32>
    %174 = arith.addf %173, %172 : vector<2x64xf32>
    %cst_78 = arith.constant 1.000000e+00 : f32
    %175 = vector.broadcast %cst_78 : f32 to vector<2x64xf32>
    %176 = arith.divf %175, %174 : vector<2x64xf32>
    %cst_79 = arith.constant 1.06140542 : f32
    %177 = vector.broadcast %cst_79 : f32 to vector<2x64xf32>
    %178 = arith.mulf %177, %176 : vector<2x64xf32>
    %cst_80 = arith.constant -1.45315206 : f32
    %179 = vector.broadcast %cst_80 : f32 to vector<2x64xf32>
    %180 = arith.addf %178, %179 : vector<2x64xf32>
    %181 = arith.mulf %180, %176 : vector<2x64xf32>
    %cst_81 = arith.constant 1.42141378 : f32
    %182 = vector.broadcast %cst_81 : f32 to vector<2x64xf32>
    %183 = arith.addf %181, %182 : vector<2x64xf32>
    %184 = arith.mulf %183, %176 : vector<2x64xf32>
    %cst_82 = arith.constant -0.284496725 : f32
    %185 = vector.broadcast %cst_82 : f32 to vector<2x64xf32>
    %186 = arith.addf %184, %185 : vector<2x64xf32>
    %187 = arith.mulf %186, %176 : vector<2x64xf32>
    %cst_83 = arith.constant 0.254829586 : f32
    %188 = vector.broadcast %cst_83 : f32 to vector<2x64xf32>
    %189 = arith.addf %187, %188 : vector<2x64xf32>
    %190 = arith.mulf %189, %176 : vector<2x64xf32>
    %cst_84 = arith.constant 0.000000e+00 : f32
    %191 = vector.broadcast %cst_84 : f32 to vector<2x64xf32>
    %192 = arith.subf %191, %170 : vector<2x64xf32>
    %193 = arith.mulf %192, %170 : vector<2x64xf32>
    %194 = math.exp %193 : vector<2x64xf32>
    %195 = arith.mulf %190, %194 : vector<2x64xf32>
    %cst_85 = arith.constant 1.000000e+00 : f32
    %196 = vector.broadcast %cst_85 : f32 to vector<2x64xf32>
    %197 = arith.subf %196, %195 : vector<2x64xf32>
    %cst_86 = arith.constant 0.000000e+00 : f32
    %198 = vector.broadcast %cst_86 : f32 to vector<2x64xf32>
    %199 = arith.cmpf oge, %169, %198 : vector<2x64xf32>
    %cst_87 = arith.constant 0.000000e+00 : f32
    %200 = vector.broadcast %cst_87 : f32 to vector<2x64xf32>
    %201 = arith.subf %200, %197 : vector<2x64xf32>
    %202 = arith.select %199, %197, %201 : vector<2x64xi1>, vector<2x64xf32>
    %cst_88 = arith.constant 1.000000e+00 : f32
    %203 = vector.broadcast %cst_88 : f32 to vector<2x64xf32>
    %204 = arith.addf %203, %202 : vector<2x64xf32>
    %205 = arith.mulf %167, %204 : vector<2x64xf32>
    %c0_89 = arith.constant 0 : index
    %c0_90 = arith.constant 0 : index
    %206 = vector.load %arg15[%c0_89, %c0_90] : memref<64x32xf32, #tpu.memory_space<vmem>>, vector<64x32xf32>
    %cst_91 = arith.constant dense<0.000000e+00> : vector<2x32xf32>
    %207 = tpu.matmul %205, %206, %cst_91 {dimension_numbers = #tpu.dot_dimension_numbers<[1], [0], [0], [1], [0, 0, 1, 1], [], []>} : vector<2x64xf32>, vector<64x32xf32>, vector<2x32xf32> -> vector<2x32xf32>
    %c0_92 = arith.constant 0 : index
    %c0_93 = arith.constant 0 : index
    %208 = vector.load %arg16[%c0_92, %c0_93] : memref<1x32xf32, #tpu.memory_space<vmem>>, vector<1x32xf32>
    %209 = vector.broadcast %208 : vector<1x32xf32> to vector<2x32xf32>
    %210 = arith.addf %207, %209 : vector<2x32xf32>
    %c0_94 = arith.constant 0 : index
    %c0_95 = arith.constant 0 : index
    %c0_96 = arith.constant 0 : index
    %211 = vector.load %arg17[%c0_94, %c0_95, %c0_96] : memref<1x2x32xf32, #tpu.memory_space<vmem>>, vector<1x2x32xf32>
    %212 = vector.shape_cast %211 : vector<1x2x32xf32> to vector<2x32xf32>
    %213 = vector.shape_cast %210 : vector<2x32xf32> to vector<1x2x32xf32>
    tpu.vector_store %arg17[%c0_94, %c0_95, %c0_96], %213 {strides = array<i32>} : memref<1x2x32xf32, #tpu.memory_space<vmem>>, vector<1x2x32xf32>,
    %c0_97 = arith.constant 0 : index
    %c0_98 = arith.constant 0 : index
    %214 = vector.load %arg18[%c0_97, %c0_98] : memref<2x32xf32, #tpu.memory_space<vmem>>, vector<2x32xf32>
    tpu.vector_store %arg18[%c0_97, %c0_98], %210 {strides = array<i32>} : memref<2x32xf32, #tpu.memory_space<vmem>>, vector<2x32xf32>,
    return
  }
  func.func @transform_0(%arg0: i32, %arg1: i32) -> (i32, i32) {
    %c0_i32 = arith.constant 0 : i32
    %c0_i32_0 = arith.constant 0 : i32
    return %arg0, %c0_i32 : i32, i32
  }
  func.func @transform_1(%arg0: i32, %arg1: i32) -> (i32, i32) {
    %c0_i32 = arith.constant 0 : i32
    %c0_i32_0 = arith.constant 0 : i32
    %c0_i32_1 = arith.constant 0 : i32
    return %c0_i32, %c0_i32_0 : i32, i32
  }
  func.func @transform_2(%arg0: i32, %arg1: i32) -> (i32, i32) {
    %c0_i32 = arith.constant 0 : i32
    %c0_i32_0 = arith.constant 0 : i32
    %c0_i32_1 = arith.constant 0 : i32
    return %c0_i32, %c0_i32_0 : i32, i32
  }
  func.func @transform_3(%arg0: i32, %arg1: i32) -> (i32, i32) {
    %c0_i32 = arith.constant 0 : i32
    %c0_i32_0 = arith.constant 0 : i32
    %c0_i32_1 = arith.constant 0 : i32
    return %c0_i32, %c0_i32_0 : i32, i32
  }
  func.func @transform_4(%arg0: i32, %arg1: i32) -> (i32, i32) {
    %c0_i32 = arith.constant 0 : i32
    %c0_i32_0 = arith.constant 0 : i32
    %c0_i32_1 = arith.constant 0 : i32
    return %c0_i32, %c0_i32_0 : i32, i32
  }
  func.func @transform_5(%arg0: i32, %arg1: i32) -> (i32, i32) {
    %c0_i32 = arith.constant 0 : i32
    %c0_i32_0 = arith.constant 0 : i32
    %c0_i32_1 = arith.constant 0 : i32
    return %c0_i32, %c0_i32_0 : i32, i32
  }
  func.func @transform_6(%arg0: i32, %arg1: i32) -> (i32, i32) {
    %c0_i32 = arith.constant 0 : i32
    %c0_i32_0 = arith.constant 0 : i32
    %c0_i32_1 = arith.constant 0 : i32
    return %c0_i32, %c0_i32_0 : i32, i32
  }
  func.func @transform_7(%arg0: i32, %arg1: i32) -> (i32, i32) {
    %c0_i32 = arith.constant 0 : i32
    %c0_i32_0 = arith.constant 0 : i32
    %c0_i32_1 = arith.constant 0 : i32
    return %c0_i32, %c0_i32_0 : i32, i32
  }
  func.func @transform_8(%arg0: i32, %arg1: i32) -> (i32, i32) {
    %c0_i32 = arith.constant 0 : i32
    %c0_i32_0 = arith.constant 0 : i32
    %c0_i32_1 = arith.constant 0 : i32
    return %c0_i32, %c0_i32_0 : i32, i32
  }
  func.func @transform_9(%arg0: i32, %arg1: i32) -> (i32, i32, i32) {
    %c0_i32 = arith.constant 0 : i32
    %c0_i32_0 = arith.constant 0 : i32
    %c0_i32_1 = arith.constant 0 : i32
    %c0_i32_2 = arith.constant 0 : i32
    return %c0_i32, %c0_i32_0, %c0_i32_1 : i32, i32, i32
  }
  func.func @transform_10(%arg0: i32, %arg1: i32) -> (i32, i32) {
    %c0_i32 = arith.constant 0 : i32
    %c0_i32_0 = arith.constant 0 : i32
    %c0_i32_1 = arith.constant 0 : i32
    return %c0_i32, %c0_i32_0 : i32, i32
  }
  func.func @transform_11(%arg0: i32, %arg1: i32) -> (i32, i32) {
    %c0_i32 = arith.constant 0 : i32
    %c0_i32_0 = arith.constant 0 : i32
    %c0_i32_1 = arith.constant 0 : i32
    return %c0_i32, %c0_i32_0 : i32, i32
  }
  func.func @transform_12(%arg0: i32, %arg1: i32) -> (i32, i32) {
    %c0_i32 = arith.constant 0 : i32
    %c0_i32_0 = arith.constant 0 : i32
    %c0_i32_1 = arith.constant 0 : i32
    return %c0_i32, %c0_i32_0 : i32, i32
  }
  func.func @transform_13(%arg0: i32, %arg1: i32) -> (i32, i32) {
    %c0_i32 = arith.constant 0 : i32
    %c0_i32_0 = arith.constant 0 : i32
    %c0_i32_1 = arith.constant 0 : i32
    return %c0_i32, %c0_i32_0 : i32, i32
  }
  func.func @transform_14(%arg0: i32, %arg1: i32) -> (i32, i32) {
    %c0_i32 = arith.constant 0 : i32
    %c0_i32_0 = arith.constant 0 : i32
    %c0_i32_1 = arith.constant 0 : i32
    return %c0_i32, %c0_i32_0 : i32, i32
  }
  func.func @transform_15(%arg0: i32, %arg1: i32) -> (i32, i32, i32) {
    %c0_i32 = arith.constant 0 : i32
    %c0_i32_0 = arith.constant 0 : i32
    return %arg1, %arg0, %c0_i32 : i32, i32, i32
  }
}

</mosaic_0001>

<llo_original>
// kernel: _run_prover.1
$region0: #{_run_prover.1}
  #allocation0 [shape = 'u32[]', space=smem, size = 0x4, offset = 0x4, fixed_abs, tag = 'smem constant byte address 0x4 - core index']
  #allocation1 [shape = 'u32[144,128]{1,0:T(1,128)}', space=vmem, size = 0x12000, scoped, tag = 'internal scratch']
  #allocation2 [shape = 'f32[2,32]{1,0:T(2,128)}', space=vmem, size = 0x400, scoped, tag = 'scratch operand']
  #allocation3 [shape = 'f32[3,2,32]{2,1,0:T(2,128)}', space=vmem, size = 0xc00, scoped, tag = 'scratch operand']
  #allocation4 [shape = 'f32[3,2,32]{2,1,0:T(2,128)}', space=vmem, size = 0xc00, scoped, tag = 'scratch operand']
  %s0 = inlined_call_operand.vmem [shape: f32[2,32], index: 0, kind: input, shape index: {}]
  %s1 = inlined_call_operand.vmem [shape: f32[16,32], index: 1, kind: input, shape index: {}]
  %s2 = inlined_call_operand.vmem [shape: f32[16,32], index: 2, kind: input, shape index: {}]
  %s3 = inlined_call_operand.vmem [shape: f32[32,128], index: 3, kind: input, shape index: {}]
  %s4 = inlined_call_operand.vmem [shape: f32[1,128], index: 4, kind: input, shape index: {}]
  %s5 = inlined_call_operand.vmem [shape: f32[32,32], index: 5, kind: input, shape index: {}]
  %s6 = inlined_call_operand.vmem [shape: f32[1,32], index: 6, kind: input, shape index: {}]
  %s7 = inlined_call_operand.vmem [shape: f32[32,32], index: 7, kind: input, shape index: {}]
  %s8 = inlined_call_operand.vmem [shape: f32[1,32], index: 8, kind: input, shape index: {}]
  %s9 = inlined_call_operand.vmem [shape: f32[3,32,64], index: 9, kind: input, shape index: {}]
  %s10 = inlined_call_operand.vmem [shape: f32[1,64], index: 10, kind: input, shape index: {}]
  %s11 = inlined_call_operand.vmem [shape: f32[1,64], index: 11, kind: input, shape index: {}]
  %s12 = inlined_call_operand.vmem [shape: f32[1,64], index: 12, kind: input, shape index: {}]
  %s13 = inlined_call_operand.vmem [shape: f32[64,32], index: 13, kind: input, shape index: {}]
  %s14 = inlined_call_operand.vmem [shape: f32[1,32], index: 14, kind: input, shape index: {}]
  %s15 = inlined_call_operand.vmem [shape: f32[3,2,32], index: 15, kind: output, shape index: {}]
  %s16 = sld [smem:[#allocation0]]
  $region97: #{_run_prover.1} parent=0
    _
  %s18 = ssub.s32 1, %s16
  %s19 = scalar_select 0, %s18, %s16
  loop: start=0, step=1, limit=5
  $region2: #{_run_prover.1} parent=0 // loop_pre_header
    _
  $region3: #{_run_prover.1} parent=0 // loop_header
    %s21 = sphi 0, %s25
    %p22 = scmp.ge.s32.totalorder %s21, 5
    %s28 = sphi 0, %s40
    %s29 = sphi 0, %s36
    %s30 = sphi 0, %s28
    %s31 = sphi 0, %s29
    %s32 = sphi 0, %s30
    %s33 = sphi 0, %s31
    %s43 = sphi 0, %s45
    %s46 = sphi 0, %s43
    %s47 = sphi 0, %s46
    %s63 = sphi 0, %s47
    %s67 = sphi 0, %s67
    %s69 = sphi 0, %s67
    %s70 = sphi 0, %s69
    %s84 = sphi 0, %s70
    %s88 = sphi 0, %s88
    %s90 = sphi 0, %s88
    %s91 = sphi 0, %s90
    %s105 = sphi 0, %s91
    %s109 = sphi 0, %s109
    %s111 = sphi 0, %s109
    %s112 = sphi 0, %s111
    %s126 = sphi 0, %s112
    %s130 = sphi 0, %s130
    %s132 = sphi 0, %s130
    %s133 = sphi 0, %s132
    %s147 = sphi 0, %s133
    %s151 = sphi 0, %s151
    %s153 = sphi 0, %s151
    %s154 = sphi 0, %s153
    %s168 = sphi 0, %s154
    %s172 = sphi 0, %s172
    %s174 = sphi 0, %s172
    %s175 = sphi 0, %s174
    %s189 = sphi 0, %s175
    %s193 = sphi 0, %s193
    %s195 = sphi 0, %s193
    %s196 = sphi 0, %s195
    %s210 = sphi 0, %s196
    %s214 = sphi 0, %s214
    %s216 = sphi 0, %s214
    %s217 = sphi 0, %s216
    %s231 = sphi 0, %s217
    %s235 = sphi 0, %s235
    %s237 = sphi 0, %s235
    %s238 = sphi 0, %s237
    %s252 = sphi 0, %s238
    %s256 = sphi 0, %s256
    %s258 = sphi 0, %s256
    %s259 = sphi 0, %s258
    %s273 = sphi 0, %s259
    %s277 = sphi 0, %s277
    %s279 = sphi 0, %s277
    %s280 = sphi 0, %s279
    %s294 = sphi 0, %s280
    %s298 = sphi 0, %s298
    %s300 = sphi 0, %s298
    %s301 = sphi 0, %s300
    %s315 = sphi 0, %s301
    %s319 = sphi 0, %s319
    %s321 = sphi 0, %s319
    %s322 = sphi 0, %s321
    %s336 = sphi 0, %s322
    %s340 = sphi 0, %s340
    %s342 = sphi 0, %s340
    %s343 = sphi 0, %s342
    %s357 = sphi 0, %s343
    %s365 = sphi 0, %s367
    %s368 = sphi 0, %s365
    %s369 = sphi 0, %s368
    %s385 = sphi 0, %s369
  $region4: #{_run_prover.1} parent=0 // loop_header_branch
    %24 = sbr.rel (%p22) target = $region8
  $region5: #{_run_prover.1} parent=0 // loop_body
    %s26 = ssub.s32 %s21, 1
    %s27 = ssub.s32 %s21, 2
    %s34 = sadd.s32 1, %s29
    %p35 = scmp.ge.s32.totalorder %s34, 3
    %s36 = scalar_select %p35, 0, %s34
    %s37 = sadd.s32 1, %s28
    %s38 = scalar_select %p35, %s37, %s28
    %p39 = scmp.ge.s32.totalorder %s38, 1
    %s40 = scalar_select %p39, 0, %s38
    %s41 = ssub.s32 %s28, %s40
    %p42 = scmp.eq.s32.totalorder %s41, 0
    %s44 = sadd.s32 %s43, 1
    %s45 = scalar_select %p42, %s43, %s44
    %p48 = pneg %p42
    %p49 = scmp.eq.s32.totalorder %s21, 2
    %p50 = por %p48, %p49
    %p51 = scmp.ne.s32.totalorder %s43, %s46
    %p52 = scmp.eq.s32.totalorder %s21, 0
    %p53 = por %p51, %p52
    %p54 = scmp.ne.s32.totalorder %s43, %s46
    %p55 = scmp.eq.s32.totalorder %s26, 2
    %p56 = por %p54, %p55
    %p57 = scmp.ne.s32.totalorder %s46, %s47
    %p58 = scmp.eq.s32.totalorder %s26, 0
    %p59 = por %p57, %p58
    %p60 = scmp.ne.s32.totalorder %s46, %s47
    %p61 = scmp.eq.s32.totalorder %s27, 2
    %p62 = por %p60, %p61
    %p64 = scmp.ne.s32.totalorder %s47, %s63
    %p65 = scmp.eq.s32.totalorder %s27, 0
    %p66 = por %p64, %p65
    %s68 = sadd.s32 %s67, 1
    %p71 = scmp.eq.s32.totalorder %s21, 2
    %p72 = scmp.ne.s32.totalorder %s67, %s69
    %p73 = scmp.eq.s32.totalorder %s21, 0
    %p74 = por %p72, %p73
    %p75 = scmp.ne.s32.totalorder %s67, %s69
    %p76 = scmp.eq.s32.totalorder %s26, 2
    %p77 = por %p75, %p76
    %p78 = scmp.ne.s32.totalorder %s69, %s70
    %p79 = scmp.eq.s32.totalorder %s26, 0
    %p80 = por %p78, %p79
    %p81 = scmp.ne.s32.totalorder %s69, %s70
    %p82 = scmp.eq.s32.totalorder %s27, 2
    %p83 = por %p81, %p82
    %p85 = scmp.ne.s32.totalorder %s70, %s84
    %p86 = scmp.eq.s32.totalorder %s27, 0
    %p87 = por %p85, %p86
    %s89 = sadd.s32 %s88, 1
    %p92 = scmp.eq.s32.totalorder %s21, 2
    %p93 = scmp.ne.s32.totalorder %s88, %s90
    %p94 = scmp.eq.s32.totalorder %s21, 0
    %p95 = por %p93, %p94
    %p96 = scmp.ne.s32.totalorder %s88, %s90
    %p97 = scmp.eq.s32.totalorder %s26, 2
    %p98 = por %p96, %p97
    %p99 = scmp.ne.s32.totalorder %s90, %s91
    %p100 = scmp.eq.s32.totalorder %s26, 0
    %p101 = por %p99, %p100
    %p102 = scmp.ne.s32.totalorder %s90, %s91
    %p103 = scmp.eq.s32.totalorder %s27, 2
    %p104 = por %p102, %p103
    %p106 = scmp.ne.s32.totalorder %s91, %s105
    %p107 = scmp.eq.s32.totalorder %s27, 0
    %p108 = por %p106, %p107
    %s110 = sadd.s32 %s109, 1
    %p113 = scmp.eq.s32.totalorder %s21, 2
    %p114 = scmp.ne.s32.totalorder %s109, %s111
    %p115 = scmp.eq.s32.totalorder %s21, 0
    %p116 = por %p114, %p115
    %p117 = scmp.ne.s32.totalorder %s109, %s111
    %p118 = scmp.eq.s32.totalorder %s26, 2
    %p119 = por %p117, %p118
    %p120 = scmp.ne.s32.totalorder %s111, %s112
    %p121 = scmp.eq.s32.totalorder %s26, 0
    %p122 = por %p120, %p121
    %p123 = scmp.ne.s32.totalorder %s111, %s112
    %p124 = scmp.eq.s32.totalorder %s27, 2
    %p125 = por %p123, %p124
    %p127 = scmp.ne.s32.totalorder %s112, %s126
    %p128 = scmp.eq.s32.totalorder %s27, 0
    %p129 = por %p127, %p128
    %s131 = sadd.s32 %s130, 1
    %p134 = scmp.eq.s32.totalorder %s21, 2
    %p135 = scmp.ne.s32.totalorder %s130, %s132
    %p136 = scmp.eq.s32.totalorder %s21, 0
    %p137 = por %p135, %p136
    %p138 = scmp.ne.s32.totalorder %s130, %s132
    %p139 = scmp.eq.s32.totalorder %s26, 2
    %p140 = por %p138, %p139
    %p141 = scmp.ne.s32.totalorder %s132, %s133
    %p142 = scmp.eq.s32.totalorder %s26, 0
    %p143 = por %p141, %p142
    %p144 = scmp.ne.s32.totalorder %s132, %s133
    %p145 = scmp.eq.s32.totalorder %s27, 2
    %p146 = por %p144, %p145
    %p148 = scmp.ne.s32.totalorder %s133, %s147
    %p149 = scmp.eq.s32.totalorder %s27, 0
    %p150 = por %p148, %p149
    %s152 = sadd.s32 %s151, 1
    %p155 = scmp.eq.s32.totalorder %s21, 2
    %p156 = scmp.ne.s32.totalorder %s151, %s153
    %p157 = scmp.eq.s32.totalorder %s21, 0
    %p158 = por %p156, %p157
    %p159 = scmp.ne.s32.totalorder %s151, %s153
    %p160 = scmp.eq.s32.totalorder %s26, 2
    %p161 = por %p159, %p160
    %p162 = scmp.ne.s32.totalorder %s153, %s154
    %p163 = scmp.eq.s32.totalorder %s26, 0
    %p164 = por %p162, %p163
    %p165 = scmp.ne.s32.totalorder %s153, %s154
    %p166 = scmp.eq.s32.totalorder %s27, 2
    %p167 = por %p165, %p166
    %p169 = scmp.ne.s32.totalorder %s154, %s168
    %p170 = scmp.eq.s32.totalorder %s27, 0
    %p171 = por %p169, %p170
    %s173 = sadd.s32 %s172, 1
    %p176 = scmp.eq.s32.totalorder %s21, 2
    %p177 = scmp.ne.s32.totalorder %s172, %s174
    %p178 = scmp.eq.s32.totalorder %s21, 0
    %p179 = por %p177, %p178
    %p180 = scmp.ne.s32.totalorder %s172, %s174
    %p181 = scmp.eq.s32.totalorder %s26, 2
    %p182 = por %p180, %p181
    %p183 = scmp.ne.s32.totalorder %s174, %s175
    %p184 = scmp.eq.s32.totalorder %s26, 0
    %p185 = por %p183, %p184
    %p186 = scmp.ne.s32.totalorder %s174, %s175
    %p187 = scmp.eq.s32.totalorder %s27, 2
    %p188 = por %p186, %p187
    %p190 = scmp.ne.s32.totalorder %s175, %s189
    %p191 = scmp.eq.s32.totalorder %s27, 0
    %p192 = por %p190, %p191
    %s194 = sadd.s32 %s193, 1
    %p197 = scmp.eq.s32.totalorder %s21, 2
    %p198 = scmp.ne.s32.totalorder %s193, %s195
    %p199 = scmp.eq.s32.totalorder %s21, 0
    %p200 = por %p198, %p199
    %p201 = scmp.ne.s32.totalorder %s193, %s195
    %p202 = scmp.eq.s32.totalorder %s26, 2
    %p203 = por %p201, %p202
    %p204 = scmp.ne.s32.totalorder %s195, %s196
    %p205 = scmp.eq.s32.totalorder %s26, 0
    %p206 = por %p204, %p205
    %p207 = scmp.ne.s32.totalorder %s195, %s196
    %p208 = scmp.eq.s32.totalorder %s27, 2
    %p209 = por %p207, %p208
    %p211 = scmp.ne.s32.totalorder %s196, %s210
    %p212 = scmp.eq.s32.totalorder %s27, 0
    %p213 = por %p211, %p212
    %s215 = sadd.s32 %s214, 1
    %p218 = scmp.eq.s32.totalorder %s21, 2
    %p219 = scmp.ne.s32.totalorder %s214, %s216
    %p220 = scmp.eq.s32.totalorder %s21, 0
    %p221 = por %p219, %p220
    %p222 = scmp.ne.s32.totalorder %s214, %s216
    %p223 = scmp.eq.s32.totalorder %s26, 2
    %p224 = por %p222, %p223
    %p225 = scmp.ne.s32.totalorder %s216, %s217
    %p226 = scmp.eq.s32.totalorder %s26, 0
    %p227 = por %p225, %p226
    %p228 = scmp.ne.s32.totalorder %s216, %s217
    %p229 = scmp.eq.s32.totalorder %s27, 2
    %p230 = por %p228, %p229
    %p232 = scmp.ne.s32.totalorder %s217, %s231
    %p233 = scmp.eq.s32.totalorder %s27, 0
    %p234 = por %p232, %p233
    %s236 = sadd.s32 %s235, 1
    %p239 = scmp.eq.s32.totalorder %s21, 2
    %p240 = scmp.ne.s32.totalorder %s235, %s237
    %p241 = scmp.eq.s32.totalorder %s21, 0
    %p242 = por %p240, %p241
    %p243 = scmp.ne.s32.totalorder %s235, %s237
    %p244 = scmp.eq.s32.totalorder %s26, 2
    %p245 = por %p243, %p244
    %p246 = scmp.ne.s32.totalorder %s237, %s238
    %p247 = scmp.eq.s32.totalorder %s26, 0
    %p248 = por %p246, %p247
    %p249 = scmp.ne.s32.totalorder %s237, %s238
    %p250 = scmp.eq.s32.totalorder %s27, 2
    %p251 = por %p249, %p250
    %p253 = scmp.ne.s32.totalorder %s238, %s252
    %p254 = scmp.eq.s32.totalorder %s27, 0
    %p255 = por %p253, %p254
    %s257 = sadd.s32 %s256, 1
    %p260 = scmp.eq.s32.totalorder %s21, 2
    %p261 = scmp.ne.s32.totalorder %s256, %s258
    %p262 = scmp.eq.s32.totalorder %s21, 0
    %p263 = por %p261, %p262
    %p264 = scmp.ne.s32.totalorder %s256, %s258
    %p265 = scmp.eq.s32.totalorder %s26, 2
    %p266 = por %p264, %p265
    %p267 = scmp.ne.s32.totalorder %s258, %s259
    %p268 = scmp.eq.s32.totalorder %s26, 0
    %p269 = por %p267, %p268
    %p270 = scmp.ne.s32.totalorder %s258, %s259
    %p271 = scmp.eq.s32.totalorder %s27, 2
    %p272 = por %p270, %p271
    %p274 = scmp.ne.s32.totalorder %s259, %s273
    %p275 = scmp.eq.s32.totalorder %s27, 0
    %p276 = por %p274, %p275
    %s278 = sadd.s32 %s277, 1
    %p281 = scmp.eq.s32.totalorder %s21, 2
    %p282 = scmp.ne.s32.totalorder %s277, %s279
    %p283 = scmp.eq.s32.totalorder %s21, 0
    %p284 = por %p282, %p283
    %p285 = scmp.ne.s32.totalorder %s277, %s279
    %p286 = scmp.eq.s32.totalorder %s26, 2
    %p287 = por %p285, %p286
    %p288 = scmp.ne.s32.totalorder %s279, %s280
    %p289 = scmp.eq.s32.totalorder %s26, 0
    %p290 = por %p288, %p289
    %p291 = scmp.ne.s32.totalorder %s279, %s280
    %p292 = scmp.eq.s32.totalorder %s27, 2
    %p293 = por %p291, %p292
    %p295 = scmp.ne.s32.totalorder %s280, %s294
    %p296 = scmp.eq.s32.totalorder %s27, 0
    %p297 = por %p295, %p296
    %s299 = sadd.s32 %s298, 1
    %p302 = scmp.eq.s32.totalorder %s21, 2
    %p303 = scmp.ne.s32.totalorder %s298, %s300
    %p304 = scmp.eq.s32.totalorder %s21, 0
    %p305 = por %p303, %p304
    %p306 = scmp.ne.s32.totalorder %s298, %s300
    %p307 = scmp.eq.s32.totalorder %s26, 2
    %p308 = por %p306, %p307
    %p309 = scmp.ne.s32.totalorder %s300, %s301
    %p310 = scmp.eq.s32.totalorder %s26, 0
    %p311 = por %p309, %p310
    %p312 = scmp.ne.s32.totalorder %s300, %s301
    %p313 = scmp.eq.s32.totalorder %s27, 2
    %p314 = por %p312, %p313
    %p316 = scmp.ne.s32.totalorder %s301, %s315
    %p317 = scmp.eq.s32.totalorder %s27, 0
    %p318 = por %p316, %p317
    %s320 = sadd.s32 %s319, 1
    %p323 = scmp.eq.s32.totalorder %s21, 2
    %p324 = scmp.ne.s32.totalorder %s319, %s321
    %p325 = scmp.eq.s32.totalorder %s21, 0
    %p326 = por %p324, %p325
    %p327 = scmp.ne.s32.totalorder %s319, %s321
    %p328 = scmp.eq.s32.totalorder %s26, 2
    %p329 = por %p327, %p328
    %p330 = scmp.ne.s32.totalorder %s321, %s322
    %p331 = scmp.eq.s32.totalorder %s26, 0
    %p332 = por %p330, %p331
    %p333 = scmp.ne.s32.totalorder %s321, %s322
    %p334 = scmp.eq.s32.totalorder %s27, 2
    %p335 = por %p333, %p334
    %p337 = scmp.ne.s32.totalorder %s322, %s336
    %p338 = scmp.eq.s32.totalorder %s27, 0
    %p339 = por %p337, %p338
    %s341 = sadd.s32 %s340, 1
    %p344 = scmp.eq.s32.totalorder %s21, 2
    %p345 = scmp.ne.s32.totalorder %s340, %s342
    %p346 = scmp.eq.s32.totalorder %s21, 0
    %p347 = por %p345, %p346
    %p348 = scmp.ne.s32.totalorder %s340, %s342
    %p349 = scmp.eq.s32.totalorder %s26, 2
    %p350 = por %p348, %p349
    %p351 = scmp.ne.s32.totalorder %s342, %s343
    %p352 = scmp.eq.s32.totalorder %s26, 0
    %p353 = por %p351, %p352
    %p354 = scmp.ne.s32.totalorder %s342, %s343
    %p355 = scmp.eq.s32.totalorder %s27, 2
    %p356 = por %p354, %p355
    %p358 = scmp.ne.s32.totalorder %s343, %s357
    %p359 = scmp.eq.s32.totalorder %s27, 0
    %p360 = por %p358, %p359
    %s361 = ssub.s32 %s29, %s36
    %s362 = ssub.s32 %s28, %s40
    %s363 = sor.u32 %s361, %s362
    %p364 = scmp.eq.s32.totalorder %s363, 0
    %s366 = sadd.s32 %s365, 1
    %s367 = scalar_select %p364, %s365, %s366
    %p370 = pneg %p364
    %p371 = scmp.eq.s32.totalorder %s21, 2
    %p372 = por %p370, %p371
    %p373 = scmp.ne.s32.totalorder %s365, %s368
    %p374 = scmp.eq.s32.totalorder %s21, 0
    %p375 = por %p373, %p374
    %p376 = scmp.ne.s32.totalorder %s365, %s368
    %p377 = scmp.eq.s32.totalorder %s26, 2
    %p378 = por %p376, %p377
    %p379 = scmp.ne.s32.totalorder %s368, %s369
    %p380 = scmp.eq.s32.totalorder %s26, 0
    %p381 = por %p379, %p380
    %p382 = scmp.ne.s32.totalorder %s368, %s369
    %p383 = scmp.eq.s32.totalorder %s27, 2
    %p384 = por %p382, %p383
    %p386 = scmp.ne.s32.totalorder %s369, %s385
    %p387 = scmp.eq.s32.totalorder %s27, 0
    %p388 = por %p386, %p387
    %p389 = scmp.le.s32.totalorder 1, %s21
    %p390 = scmp.lt.s32.totalorder %s21, 4
    %p391 = pnand %p389, %p390
    %p392 = pneg %p391
    // Predicated region
    $region9: #{_run_prover.1} parent=5 // pred_check
      _
    $region10: #{_run_prover.1} parent=5 // pred_check_branch
      %394 = sbr.rel (%p391) target = $region12
    $region11: #{_run_prover.1} parent=5 // pred_region
      %s395 = ssub.s32 %s21, 1
      // Predicated region
      $region13: #{_run_prover.1} parent=11 // pred_check
        %p396 = pneg %p59
      $region14: #{_run_prover.1} parent=11 // pred_check_branch
        %398 = sbr.rel (%p396) target = $region16
      $region15: #{_run_prover.1} parent=11 // pred_region
        %p399 = scmp.lt.s32.totalorder %s30, 0
        %s400 = scalar_select %p399, %s30, 0
        %s401 = smul.addr %s400, 2
        %s402 = scalar_lea.vmem %s0, %s401
      $region16: #{_run_prover.1} parent=11 // pred_fallthru
        _
      // Predicated region
      $region17: #{_run_prover.1} parent=11 // pred_check
        %p403 = pneg %p80
      $region18: #{_run_prover.1} parent=11 // pred_check_branch
        %405 = sbr.rel (%p403) target = $region20
      $region19: #{_run_prover.1} parent=11 // pred_region
        _
      $region20: #{_run_prover.1} parent=11 // pred_fallthru
        _
      // Predicated region
      $region21: #{_run_prover.1} parent=11 // pred_check
        %p406 = pneg %p101
      $region22: #{_run_prover.1} parent=11 // pred_check_branch
        %408 = sbr.rel (%p406) target = $region24
      $region23: #{_run_prover.1} parent=11 // pred_region
        _
      $region24: #{_run_prover.1} parent=11 // pred_fallthru
        _
      // Predicated region
      $region25: #{_run_prover.1} parent=11 // pred_check
        %p409 = pneg %p122
      $region26: #{_run_prover.1} parent=11 // pred_check_branch
        %411 = sbr.rel (%p409) target = $region28
      $region27: #{_run_prover.1} parent=11 // pred_region
        _
      $region28: #{_run_prover.1} parent=11 // pred_fallthru
        _
      // Predicated region
      $region29: #{_run_prover.1} parent=11 // pred_check
        %p412 = pneg %p143
      $region30: #{_run_prover.1} parent=11 // pred_check_branch
        %414 = sbr.rel (%p412) target = $region32
      $region31: #{_run_prover.1} parent=11 // pred_region
        _
      $region32: #{_run_prover.1} parent=11 // pred_fallthru
        _
      // Predicated region
      $region33: #{_run_prover.1} parent=11 // pred_check
        %p415 = pneg %p164
      $region34: #{_run_prover.1} parent=11 // pred_check_branch
        %417 = sbr.rel (%p415) target = $region36
      $region35: #{_run_prover.1} parent=11 // pred_region
        _
      $region36: #{_run_prover.1} parent=11 // pred_fallthru
        _
      // Predicated region
      $region37: #{_run_prover.1} parent=11 // pred_check
        %p418 = pneg %p185
      $region38: #{_run_prover.1} parent=11 // pred_check_branch
        %420 = sbr.rel (%p418) target = $region40
      $region39: #{_run_prover.1} parent=11 // pred_region
        _
      $region40: #{_run_prover.1} parent=11 // pred_fallthru
        _
      // Predicated region
      $region41: #{_run_prover.1} parent=11 // pred_check
        %p421 = pneg %p206
      $region42: #{_run_prover.1} parent=11 // pred_check_branch
        %423 = sbr.rel (%p421) target = $region44
      $region43: #{_run_prover.1} parent=11 // pred_region
        _
      $region44: #{_run_prover.1} parent=11 // pred_fallthru
        _
      // Predicated region
      $region45: #{_run_prover.1} parent=11 // pred_check
        %p424 = pneg %p227
      $region46: #{_run_prover.1} parent=11 // pred_check_branch
        %426 = sbr.rel (%p424) target = $region48
      $region47: #{_run_prover.1} parent=11 // pred_region
        _
      $region48: #{_run_prover.1} parent=11 // pred_fallthru
        _
      // Predicated region
      $region49: #{_run_prover.1} parent=11 // pred_check
        %p427 = pneg %p248
      $region50: #{_run_prover.1} parent=11 // pred_check_branch
        %429 = sbr.rel (%p427) target = $region52
      $region51: #{_run_prover.1} parent=11 // pred_region
        _
      $region52: #{_run_prover.1} parent=11 // pred_fallthru
        _
      // Predicated region
      $region53: #{_run_prover.1} parent=11 // pred_check
        %p430 = pneg %p269
      $region54: #{_run_prover.1} parent=11 // pred_check_branch
        %432 = sbr.rel (%p430) target = $region56
      $region55: #{_run_prover.1} parent=11 // pred_region
        _
      $region56: #{_run_prover.1} parent=11 // pred_fallthru
        _
      // Predicated region
      $region57: #{_run_prover.1} parent=11 // pred_check
        %p433 = pneg %p290
      $region58: #{_run_prover.1} parent=11 // pred_check_branch
        %435 = sbr.rel (%p433) target = $region60
      $region59: #{_run_prover.1} parent=11 // pred_region
        _
      $region60: #{_run_prover.1} parent=11 // pred_fallthru
        _
      // Predicated region
      $region61: #{_run_prover.1} parent=11 // pred_check
        %p436 = pneg %p311
      $region62: #{_run_prover.1} parent=11 // pred_check_branch
        %438 = sbr.rel (%p436) target = $region64
      $region63: #{_run_prover.1} parent=11 // pred_region
        _
      $region64: #{_run_prover.1} parent=11 // pred_fallthru
        _
      // Predicated region
      $region65: #{_run_prover.1} parent=11 // pred_check
        %p439 = pneg %p332
      $region66: #{_run_prover.1} parent=11 // pred_check_branch
        %441 = sbr.rel (%p439) target = $region68
      $region67: #{_run_prover.1} parent=11 // pred_region
        _
      $region68: #{_run_prover.1} parent=11 // pred_fallthru
        _
      // Predicated region
      $region69: #{_run_prover.1} parent=11 // pred_check
        %p442 = pneg %p353
      $region70: #{_run_prover.1} parent=11 // pred_check_branch
        %444 = sbr.rel (%p442) target = $region72
      $region71: #{_run_prover.1} parent=11 // pred_region
        _
      $region72: #{_run_prover.1} parent=11 // pred_fallthru
        _
    $region12: #{_run_prover.1} parent=5 // pred_fallthru
      _
    %p445 = scmp.lt.s32.totalorder %s21, 3
    // Predicated region
    $region73: #{_run_prover.1} parent=5 // pred_check
      %p446 = pneg %p445
    $region74: #{_run_prover.1} parent=5 // pred_check_branch
      %448 = sbr.rel (%p446) target = $region76
    $region75: #{_run_prover.1} parent=5 // pred_region
      _
    $region76: #{_run_prover.1} parent=5 // pred_fallthru
      _
    %p449 = scmp.le.s32.totalorder 1, %s21
    %p450 = scmp.lt.s32.totalorder %s21, 4
    %p451 = pnand %p449, %p450
    %p452 = pneg %p451
    // Predicated region
    $region77: #{_run_prover.1} parent=5 // pred_check
      _
    $region78: #{_run_prover.1} parent=5 // pred_check_branch
      %454 = sbr.rel (%p451) target = $region80
    $region79: #{_run_prover.1} parent=5 // pred_region
      %s455 = ssub.s32 %s21, 1
      %p456 = scmp.lt.s32.totalorder %s30, 0
      %s457 = scalar_select %p456, %s30, 0
      %s458 = smul.addr %s457, 2
      %s459 = scalar_lea.vmem %s0, %s458
      %p460 = pneg %p59
      %p461 = pneg %p56
      %p462 = pneg %p80
      %p463 = pneg %p77
      %p464 = pneg %p101
      %p465 = pneg %p98
      %p466 = pneg %p122
      %p467 = pneg %p119
      %p468 = pneg %p143
      %p469 = pneg %p140
      %p470 = pneg %p164
      %p471 = pneg %p161
      %p472 = pneg %p185
      %p473 = pneg %p182
      %p474 = pneg %p206
      %p475 = pneg %p203
      %p476 = pneg %p227
      %p477 = pneg %p224
      %p478 = pneg %p248
      %p479 = pneg %p245
      %p480 = pneg %p269
      %p481 = pneg %p266
      %p482 = pneg %p290
      %p483 = pneg %p287
      %p484 = pneg %p311
      %p485 = pneg %p308
      %p486 = pneg %p332
      %p487 = pneg %p329
      %p488 = pneg %p353
      %p489 = pneg %p350
      %p490 = pneg %p381
      %p491 = pneg %p378
      %p492 = scmp.lt.s32.totalorder %s31, 2
      %s493 = scalar_select %p492, %s31, 2
      %p494 = scmp.lt.s32.totalorder %s30, 0
      %s495 = scalar_select %p494, %s30, 0
      %s496 = sadd.s32 %s495, %s493
      %s497 = smul.addr %s496, 2
      %s498 = scalar_lea.vmem %s15, %s497
      %p499 = scmp.lt.s32.totalorder %s30, 0
      %s500 = scalar_select %p499, %s30, 0
      %s501 = smul.addr %s500, 2
      %s502 = scalar_lea.vmem %s0, %s501
      %p503 = scmp.lt.s32.totalorder %s31, 2
      %s504 = scalar_select %p503, %s31, 2
      %p505 = scmp.lt.s32.totalorder %s30, 0
      %s506 = scalar_select %p505, %s30, 0
      %s507 = sadd.s32 %s506, %s504
      %s508 = smul.addr %s507, 2
      %s509 = scalar_lea.vmem %s15, %s508
      %p510 = scmp.eq.s32.totalorder %s31, 0
      // Predicated region
      $region81: #{_run_prover.1} parent=79 // pred_check
        %p511 = pneg %p510
      $region82: #{_run_prover.1} parent=79 // pred_check_branch
        %513 = sbr.rel (%p511) target = $region84
      $region83: #{_run_prover.1} parent=79 // pred_region
        %v514 = vld [vmem:[%s502] sm:$0x3]
        %vm515 = vcmask 254976
        %516 = vst.msk [vmem:[#allocation2] sm:$0x3] %vm515, %v514
      $region84: #{_run_prover.1} parent=79 // pred_fallthru
        _
      %v517 = vld [vmem:[#allocation2] sm:$0x3]
      %v518 = vld [vmem:[%s3] sm:$0xff]
      %v519 = vld [vmem:[%s3 + $0x8] sm:$0xff]
      %v520 = vld [vmem:[%s3 + $0x10] sm:$0xff]
      %v521 = vld [vmem:[%s3 + $0x18] sm:$0xff]
      %v522 = vld [vmem:[%s4] sm:$0x1]
      %v524 = vlaneseq
      %v525 = vshrl.u32 %v524, 7
      %v526 = vsub.s32 0, %v525
      %v527 = vrot.slane %v522, %v526
      %vm529 = vcmask 261120
      %v531 = vsel %vm529, %v517, 0
      %533 = vmatprep.subr.mxu0 0.0
      %534 = vmatpush1.msra.mxu0 0.0
      %535 = vmatprep.subr.mxu0 0.0
      %536 = vmatpush1.msra.mxu0 0.0
      %537 = vmatprep.subr.mxu0 0.0
      %538 = vmatpush1.msra.mxu0 0.0
      %539 = vmatprep.subr.mxu0 0.0
      %540 = vmatpush1.msra.mxu0 0.0
      %541 = vmatprep.subr.mxu0 0.0
      %542 = vmatpush1.msra.mxu0 0.0
      %543 = vmatprep.subr.mxu0 0.0
      %544 = vmatpush1.msra.mxu0 0.0
      %545 = vmatprep.subr.mxu0 0.0
      %546 = vmatpush1.msra.mxu0 0.0
      %547 = vmatprep.subr.mxu0 0.0
      %548 = vmatpush1.msra.mxu0 0.0
      %549 = vmatprep.subr.mxu0 0.0
      %550 = vmatpush1.msra.mxu0 0.0
      %551 = vmatprep.subr.mxu0 0.0
      %552 = vmatpush1.msra.mxu0 0.0
      %553 = vmatprep.subr.mxu0 0.0
      %554 = vmatpush1.msra.mxu0 0.0
      %555 = vmatprep.subr.mxu0 0.0
      %556 = vmatpush1.msra.mxu0 0.0
      %557 = vmatprep.subr.mxu0 0.0
      %558 = vmatpush1.msra.mxu0 %v521
      %559 = vmatprep.subr.mxu0 0.0
      %560 = vmatpush1.msra.mxu0 %v520
      %561 = vmatprep.subr.mxu0 0.0
      %562 = vmatpush1.msra.mxu0 %v519
      %563 = vmatprep.subr.mxu0 0.0
      %564 = vmatpush1.msra.mxu0 %v518
      %565 = vmatprep.subr.mxu0 0.0
      %566 = vmatpush2.msra.mxu0 0.0
      %567 = vmatprep.subr.mxu0 0.0
      %568 = vmatpush2.msra.mxu0 0.0
      %569 = vmatprep.subr.mxu0 0.0
      %570 = vmatpush2.msra.mxu0 0.0
      %571 = vmatprep.subr.mxu0 0.0
      %572 = vmatpush2.msra.mxu0 0.0
      %573 = vmatprep.subr.mxu0 0.0
      %574 = vmatpush2.msra.mxu0 0.0
      %575 = vmatprep.subr.mxu0 0.0
      %576 = vmatpush2.msra.mxu0 0.0
      %577 = vmatprep.subr.mxu0 0.0
      %578 = vmatpush2.msra.mxu0 0.0
      %579 = vmatprep.subr.mxu0 0.0
      %580 = vmatpush2.msra.mxu0 0.0
      %581 = vmatprep.subr.mxu0 0.0
      %582 = vmatpush2.msra.mxu0 0.0
      %583 = vmatprep.subr.mxu0 0.0
      %584 = vmatpush2.msra.mxu0 0.0
      %585 = vmatprep.subr.mxu0 0.0
      %586 = vmatpush2.msra.mxu0 0.0
      %587 = vmatprep.subr.mxu0 0.0
      %588 = vmatpush2.msra.mxu0 0.0
      %589 = vmatprep.subr.mxu0 0.0
      %590 = vmatpush2.msra.mxu0 0.0
      %591 = vmatprep.subr.mxu0 0.0
      %592 = vmatpush2.msra.mxu0 0.0
      %593 = vmatprep.subr.mxu0 0.0
      %594 = vmatpush2.msra.mxu0 0.0
      %595 = vmatprep.subr.mxu0 0.0
      %596 = vmatpush2.msra.mxu0 0.0
      %597 = vmatprep.mubr.f32.mxu0 0.0
      %598 = vmatmul.mubr.f32.gmra.mxu0 %v531
      %v599 = vpop.f32.mrf.mxu0
      %v600 = vadd.f32 %v527, %v599
      %v601 = vpop.f32.mrf.mxu0
      %602 = vdwg.mxu0
      %604 = vrot.lane.b32.xlu0 %v600, 64
      %v605 = vpop.permute.xlu0 %604
      %s607 = smul.u32 %s31, 2
      %s608 = scalar_lea.vmem [#allocation3], %s607
      %vm609 = vcmask 254976
      %610 = vst.msk [vmem:[%s608] sm:$0x3] %vm609, %v605
      %611 = vrot.lane.b32.xlu0 %v600, 32
      %v612 = vpop.permute.xlu0 %611
      %s614 = scalar_lea.vmem [#allocation4], %s607
      %615 = vst.msk [vmem:[%s614] sm:$0x3] %vm609, %v612
      %v616 = vld [vmem:[%s1] sm:$0xff]
      %v617 = vld [vmem:[%s1 + $0x8] sm:$0xff]
      %v618 = vld [vmem:[%s2] sm:$0xff]
      %v619 = vld [vmem:[%s2 + $0x8] sm:$0xff]
      %vm620 = vcmask 130048
      %v621 = vsel %vm620, %v600, 0
      %v624 = vsel %vm620, %v616, 0
      %v627 = vsel %vm620, %v617, 0
      %629 = vmatprep.subr.mxu0 0.0
      %630 = vmatpush1.xpose.msra.mxu0 0.0
      %631 = vmatprep.subr.mxu0 0.0
      %632 = vmatpush1.xpose.msra.mxu0 0.0
      %633 = vmatprep.subr.mxu0 0.0
      %634 = vmatpush1.xpose.msra.mxu0 0.0
      %635 = vmatprep.subr.mxu0 0.0
      %636 = vmatpush1.xpose.msra.mxu0 0.0
      %637 = vmatprep.subr.mxu0 0.0
      %638 = vmatpush1.xpose.msra.mxu0 0.0
      %639 = vmatprep.subr.mxu0 0.0
      %640 = vmatpush1.xpose.msra.mxu0 0.0
      %641 = vmatprep.subr.mxu0 0.0
      %642 = vmatpush1.xpose.msra.mxu0 0.0
      %643 = vmatprep.subr.mxu0 0.0
      %644 = vmatpush1.xpose.msra.mxu0 0.0
      %645 = vmatprep.subr.mxu0 0.0
      %646 = vmatpush1.xpose.msra.mxu0 0.0
      %647 = vmatprep.subr.mxu0 0.0
      %648 = vmatpush1.xpose.msra.mxu0 0.0
      %649 = vmatprep.subr.mxu0 0.0
      %650 = vmatpush1.xpose.msra.mxu0 0.0
      %651 = vmatprep.subr.mxu0 0.0
      %652 = vmatpush1.xpose.msra.mxu0 0.0
      %653 = vmatprep.subr.mxu0 0.0
      %654 = vmatpush1.xpose.msra.mxu0 0.0
      %655 = vmatprep.subr.mxu0 0.0
      %656 = vmatpush1.xpose.msra.mxu0 0.0
      %657 = vmatprep.subr.mxu0 0.0
      %658 = vmatpush1.xpose.msra.mxu0 %v627
      %659 = vmatprep.subr.mxu0 0.0
      %660 = vmatpush1.xpose.msra.mxu0 %v624
      %661 = vmatprep.subr.mxu0 0.0
      %662 = vmatpush2.xpose.msra.mxu0 0.0
      %663 = vmatprep.subr.mxu0 0.0
      %664 = vmatpush2.xpose.msra.mxu0 0.0
      %665 = vmatprep.subr.mxu0 0.0
      %666 = vmatpush2.xpose.msra.mxu0 0.0
      %667 = vmatprep.subr.mxu0 0.0
      %668 = vmatpush2.xpose.msra.mxu0 0.0
      %669 = vmatprep.subr.mxu0 0.0
      %670 = vmatpush2.xpose.msra.mxu0 0.0
      %671 = vmatprep.subr.mxu0 0.0
      %672 = vmatpush2.xpose.msra.mxu0 0.0
      %673 = vmatprep.subr.mxu0 0.0
      %674 = vmatpush2.xpose.msra.mxu0 0.0
      %675 = vmatprep.subr.mxu0 0.0
      %676 = vmatpush2.xpose.msra.mxu0 0.0
      %677 = vmatprep.subr.mxu0 0.0
      %678 = vmatpush2.xpose.msra.mxu0 0.0
      %679 = vmatprep.subr.mxu0 0.0
      %680 = vmatpush2.xpose.msra.mxu0 0.0
      %681 = vmatprep.subr.mxu0 0.0
      %682 = vmatpush2.xpose.msra.mxu0 0.0
      %683 = vmatprep.subr.mxu0 0.0
      %684 = vmatpush2.xpose.msra.mxu0 0.0
      %685 = vmatprep.subr.mxu0 0.0
      %686 = vmatpush2.xpose.msra.mxu0 0.0
      %687 = vmatprep.subr.mxu0 0.0
      %688 = vmatpush2.xpose.msra.mxu0 0.0
      %689 = vmatprep.subr.mxu0 0.0
      %690 = vmatpush2.xpose.msra.mxu0 0.0
      %691 = vmatprep.subr.mxu0 0.0
      %692 = vmatpush2.xpose.msra.mxu0 0.0
      %693 = vmatprep.mubr.f32.mxu0 0.0
      %694 = vmatmul.mubr.f32.gmra.mxu0 %v621
      %v695 = vpop.f32.mrf.mxu0
      %v696 = vadd.f32 0.0, %v695
      %v697 = vpop.f32.mrf.mxu0
      %698 = vdwg.mxu0
      %v699 = vmul.f32 %v696, 0.25
      %vm700 = vcmask 123904
      %v701 = vsel %vm700, %v699, -inf
      %702 = vmax.xlane.f32.xlu0 %v701
      %v703 = vpop.xlane.xlu0 %702
      %v704 = vsub.f32 %v699, %v703
      %v705 = vmul.f32 %v704, 1.442695
      %v706 = vpow.pop %v705
      %v707 = vsel %vm700, %v706, 0.0
      %708 = vadd.xlane.f32.xlu0 %v707
      %v709 = vpop.xlane.xlu0 %708
      %v710 = vrcp.pop %v709
      %v711 = vmul.f32 %v706, %v710
      %v713 = vsel %vm620, %v711, 0
      %715 = vmatprep.subr.mxu0 0.0
      %716 = vmatpush1.msra.mxu0 0.0
      %717 = vmatprep.subr.mxu0 0.0
      %718 = vmatpush1.msra.mxu0 0.0
      %719 = vmatprep.subr.mxu0 0.0
      %720 = vmatpush1.msra.mxu0 0.0
      %721 = vmatprep.subr.mxu0 0.0
      %722 = vmatpush1.msra.mxu0 0.0
      %723 = vmatprep.subr.mxu0 0.0
      %724 = vmatpush1.msra.mxu0 0.0
      %725 = vmatprep.subr.mxu0 0.0
      %726 = vmatpush1.msra.mxu0 0.0
      %727 = vmatprep.subr.mxu0 0.0
      %728 = vmatpush1.msra.mxu0 0.0
      %729 = vmatprep.subr.mxu0 0.0
      %730 = vmatpush1.msra.mxu0 0.0
      %731 = vmatprep.subr.mxu0 0.0
      %732 = vmatpush1.msra.mxu0 0.0
      %733 = vmatprep.subr.mxu0 0.0
      %734 = vmatpush1.msra.mxu0 0.0
      %735 = vmatprep.subr.mxu0 0.0
      %736 = vmatpush1.msra.mxu0 0.0
      %737 = vmatprep.subr.mxu0 0.0
      %738 = vmatpush1.msra.mxu0 0.0
      %739 = vmatprep.subr.mxu0 0.0
      %740 = vmatpush1.msra.mxu0 0.0
      %741 = vmatprep.subr.mxu0 0.0
      %742 = vmatpush1.msra.mxu0 0.0
      %743 = vmatprep.subr.mxu0 0.0
      %744 = vmatpush1.msra.mxu0 %v619
      %745 = vmatprep.subr.mxu0 0.0
      %746 = vmatpush1.msra.mxu0 %v618
      %747 = vmatprep.subr.mxu0 0.0
      %748 = vmatpush2.msra.mxu0 0.0
      %749 = vmatprep.subr.mxu0 0.0
      %750 = vmatpush2.msra.mxu0 0.0
      %751 = vmatprep.subr.mxu0 0.0
      %752 = vmatpush2.msra.mxu0 0.0
      %753 = vmatprep.subr.mxu0 0.0
      %754 = vmatpush2.msra.mxu0 0.0
      %755 = vmatprep.subr.mxu0 0.0
      %756 = vmatpush2.msra.mxu0 0.0
      %757 = vmatprep.subr.mxu0 0.0
      %758 = vmatpush2.msra.mxu0 0.0
      %759 = vmatprep.subr.mxu0 0.0
      %760 = vmatpush2.msra.mxu0 0.0
      %761 = vmatprep.subr.mxu0 0.0
      %762 = vmatpush2.msra.mxu0 0.0
      %763 = vmatprep.subr.mxu0 0.0
      %764 = vmatpush2.msra.mxu0 0.0
      %765 = vmatprep.subr.mxu0 0.0
      %766 = vmatpush2.msra.mxu0 0.0
      %767 = vmatprep.subr.mxu0 0.0
      %768 = vmatpush2.msra.mxu0 0.0
      %769 = vmatprep.subr.mxu0 0.0
      %770 = vmatpush2.msra.mxu0 0.0
      %771 = vmatprep.subr.mxu0 0.0
      %772 = vmatpush2.msra.mxu0 0.0
      %773 = vmatprep.subr.mxu0 0.0
      %774 = vmatpush2.msra.mxu0 0.0
      %775 = vmatprep.subr.mxu0 0.0
      %776 = vmatpush2.msra.mxu0 0.0
      %777 = vmatprep.subr.mxu0 0.0
      %778 = vmatpush2.msra.mxu0 0.0
      %779 = vmatprep.mubr.f32.mxu0 0.0
      %780 = vmatmul.mubr.f32.gmra.mxu0 %v713
      %v781 = vpop.f32.mrf.mxu0
      %v782 = vadd.f32 0.0, %v781
      %v783 = vpop.f32.mrf.mxu0
      %784 = vdwg.mxu0
      %785 = vrot.lane.b32.xlu0 %v600, 112
      %v786 = vpop.permute.xlu0 %785
      %787 = vrot.lane.b32.xlu0 %v616, 112
      %v788 = vpop.permute.xlu0 %787
      %789 = vrot.lane.b32.xlu0 %v617, 112
      %v790 = vpop.permute.xlu0 %789
      %v791 = vsel %vm620, %v786, 0
      %v793 = vsel %vm620, %v788, 0
      %v795 = vsel %vm620, %v790, 0
      %797 = vmatprep.subr.mxu0 0.0
      %798 = vmatpush1.xpose.msra.mxu0 0.0
      %799 = vmatprep.subr.mxu0 0.0
      %800 = vmatpush1.xpose.msra.mxu0 0.0
      %801 = vmatprep.subr.mxu0 0.0
      %802 = vmatpush1.xpose.msra.mxu0 0.0
      %803 = vmatprep.subr.mxu0 0.0
      %804 = vmatpush1.xpose.msra.mxu0 0.0
      %805 = vmatprep.subr.mxu0 0.0
      %806 = vmatpush1.xpose.msra.mxu0 0.0
      %807 = vmatprep.subr.mxu0 0.0
      %808 = vmatpush1.xpose.msra.mxu0 0.0
      %809 = vmatprep.subr.mxu0 0.0
      %810 = vmatpush1.xpose.msra.mxu0 0.0
      %811 = vmatprep.subr.mxu0 0.0
      %812 = vmatpush1.xpose.msra.mxu0 0.0
      %813 = vmatprep.subr.mxu0 0.0
      %814 = vmatpush1.xpose.msra.mxu0 0.0
      %815 = vmatprep.subr.mxu0 0.0
      %816 = vmatpush1.xpose.msra.mxu0 0.0
      %817 = vmatprep.subr.mxu0 0.0
      %818 = vmatpush1.xpose.msra.mxu0 0.0
      %819 = vmatprep.subr.mxu0 0.0
      %820 = vmatpush1.xpose.msra.mxu0 0.0
      %821 = vmatprep.subr.mxu0 0.0
      %822 = vmatpush1.xpose.msra.mxu0 0.0
      %823 = vmatprep.subr.mxu0 0.0
      %824 = vmatpush1.xpose.msra.mxu0 0.0
      %825 = vmatprep.subr.mxu0 0.0
      %826 = vmatpush1.xpose.msra.mxu0 %v795
      %827 = vmatprep.subr.mxu0 0.0
      %828 = vmatpush1.xpose.msra.mxu0 %v793
      %829 = vmatprep.subr.mxu0 0.0
      %830 = vmatpush2.xpose.msra.mxu0 0.0
      %831 = vmatprep.subr.mxu0 0.0
      %832 = vmatpush2.xpose.msra.mxu0 0.0
      %833 = vmatprep.subr.mxu0 0.0
      %834 = vmatpush2.xpose.msra.mxu0 0.0
      %835 = vmatprep.subr.mxu0 0.0
      %836 = vmatpush2.xpose.msra.mxu0 0.0
      %837 = vmatprep.subr.mxu0 0.0
      %838 = vmatpush2.xpose.msra.mxu0 0.0
      %839 = vmatprep.subr.mxu0 0.0
      %840 = vmatpush2.xpose.msra.mxu0 0.0
      %841 = vmatprep.subr.mxu0 0.0
      %842 = vmatpush2.xpose.msra.mxu0 0.0
      %843 = vmatprep.subr.mxu0 0.0
      %844 = vmatpush2.xpose.msra.mxu0 0.0
      %845 = vmatprep.subr.mxu0 0.0
      %846 = vmatpush2.xpose.msra.mxu0 0.0
      %847 = vmatprep.subr.mxu0 0.0
      %848 = vmatpush2.xpose.msra.mxu0 0.0
      %849 = vmatprep.subr.mxu0 0.0
      %850 = vmatpush2.xpose.msra.mxu0 0.0
      %851 = vmatprep.subr.mxu0 0.0
      %852 = vmatpush2.xpose.msra.mxu0 0.0
      %853 = vmatprep.subr.mxu0 0.0
      %854 = vmatpush2.xpose.msra.mxu0 0.0
      %855 = vmatprep.subr.mxu0 0.0
      %856 = vmatpush2.xpose.msra.mxu0 0.0
      %857 = vmatprep.subr.mxu0 0.0
      %858 = vmatpush2.xpose.msra.mxu0 0.0
      %859 = vmatprep.subr.mxu0 0.0
      %860 = vmatpush2.xpose.msra.mxu0 0.0
      %861 = vmatprep.mubr.f32.mxu0 0.0
      %862 = vmatmul.mubr.f32.gmra.mxu0 %v791
      %v863 = vpop.f32.mrf.mxu0
      %v864 = vadd.f32 0.0, %v863
      %v865 = vpop.f32.mrf.mxu0
      %866 = vdwg.mxu0
      %v867 = vmul.f32 %v864, 0.25
      %v868 = vsel %vm700, %v867, -inf
      %869 = vmax.xlane.f32.xlu0 %v868
      %v870 = vpop.xlane.xlu0 %869
      %v871 = vsub.f32 %v867, %v870
      %v872 = vmul.f32 %v871, 1.442695
      %v873 = vpow.pop %v872
      %v874 = vsel %vm700, %v873, 0.0
      %875 = vadd.xlane.f32.xlu0 %v874
      %v876 = vpop.xlane.xlu0 %875
      %v877 = vrcp.pop %v876
      %v878 = vmul.f32 %v873, %v877
      %881 = vrot.lane.b32.xlu0 %v618, 112
      %v882 = vpop.permute.xlu0 %881
      %883 = vrot.lane.b32.xlu0 %v619, 112
      %v884 = vpop.permute.xlu0 %883
      %v888 = vsel %vm620, %v878, 0
      %890 = vmatprep.subr.mxu0 0.0
      %891 = vmatpush1.msra.mxu0 0.0
      %892 = vmatprep.subr.mxu0 0.0
      %893 = vmatpush1.msra.mxu0 0.0
      %894 = vmatprep.subr.mxu0 0.0
      %895 = vmatpush1.msra.mxu0 0.0
      %896 = vmatprep.subr.mxu0 0.0
      %897 = vmatpush1.msra.mxu0 0.0
      %898 = vmatprep.subr.mxu0 0.0
      %899 = vmatpush1.msra.mxu0 0.0
      %900 = vmatprep.subr.mxu0 0.0
      %901 = vmatpush1.msra.mxu0 0.0
      %902 = vmatprep.subr.mxu0 0.0
      %903 = vmatpush1.msra.mxu0 0.0
      %904 = vmatprep.subr.mxu0 0.0
      %905 = vmatpush1.msra.mxu0 0.0
      %906 = vmatprep.subr.mxu0 0.0
      %907 = vmatpush1.msra.mxu0 0.0
      %908 = vmatprep.subr.mxu0 0.0
      %909 = vmatpush1.msra.mxu0 0.0
      %910 = vmatprep.subr.mxu0 0.0
      %911 = vmatpush1.msra.mxu0 0.0
      %912 = vmatprep.subr.mxu0 0.0
      %913 = vmatpush1.msra.mxu0 0.0
      %914 = vmatprep.subr.mxu0 0.0
      %915 = vmatpush1.msra.mxu0 0.0
      %916 = vmatprep.subr.mxu0 0.0
      %917 = vmatpush1.msra.mxu0 0.0
      %918 = vmatprep.subr.mxu0 0.0
      %919 = vmatpush1.msra.mxu0 %v884
      %920 = vmatprep.subr.mxu0 0.0
      %921 = vmatpush1.msra.mxu0 %v882
      %922 = vmatprep.subr.mxu0 0.0
      %923 = vmatpush2.msra.mxu0 0.0
      %924 = vmatprep.subr.mxu0 0.0
      %925 = vmatpush2.msra.mxu0 0.0
      %926 = vmatprep.subr.mxu0 0.0
      %927 = vmatpush2.msra.mxu0 0.0
      %928 = vmatprep.subr.mxu0 0.0
      %929 = vmatpush2.msra.mxu0 0.0
      %930 = vmatprep.subr.mxu0 0.0
      %931 = vmatpush2.msra.mxu0 0.0
      %932 = vmatprep.subr.mxu0 0.0
      %933 = vmatpush2.msra.mxu0 0.0
      %934 = vmatprep.subr.mxu0 0.0
      %935 = vmatpush2.msra.mxu0 0.0
      %936 = vmatprep.subr.mxu0 0.0
      %937 = vmatpush2.msra.mxu0 0.0
      %938 = vmatprep.subr.mxu0 0.0
      %939 = vmatpush2.msra.mxu0 0.0
      %940 = vmatprep.subr.mxu0 0.0
      %941 = vmatpush2.msra.mxu0 0.0
      %942 = vmatprep.subr.mxu0 0.0
      %943 = vmatpush2.msra.mxu0 0.0
      %944 = vmatprep.subr.mxu0 0.0
      %945 = vmatpush2.msra.mxu0 0.0
      %946 = vmatprep.subr.mxu0 0.0
      %947 = vmatpush2.msra.mxu0 0.0
      %948 = vmatprep.subr.mxu0 0.0
      %949 = vmatpush2.msra.mxu0 0.0
      %950 = vmatprep.subr.mxu0 0.0
      %951 = vmatpush2.msra.mxu0 0.0
      %952 = vmatprep.subr.mxu0 0.0
      %953 = vmatpush2.msra.mxu0 0.0
      %954 = vmatprep.mubr.f32.mxu0 0.0
      %955 = vmatmul.mubr.f32.gmra.mxu0 %v888
      %v956 = vpop.f32.mrf.mxu0
      %v957 = vadd.f32 0.0, %v956
      %v958 = vpop.f32.mrf.mxu0
      %959 = vdwg.mxu0
      %961 = vrot.lane.b32.xlu0 %v957, 16
      %v962 = vpop.permute.xlu0 %961
      %v964 = vsel %vm620, %v782, %v962
      %v965 = vld [vmem:[%s5] sm:$0xff]
      %v966 = vld [vmem:[%s5 + $0x8] sm:$0xff]
      %v967 = vld [vmem:[%s5 + $0x10] sm:$0xff]
      %v968 = vld [vmem:[%s5 + $0x18] sm:$0xff]
      %v969 = vld [vmem:[%s6] sm:$0x1]
      %v971 = vlaneseq
      %v972 = vshrl.u32 %v971, 7
      %v973 = vsub.s32 0, %v972
      %v974 = vrot.slane %v969, %v973
      %v977 = vsel %vm529, %v964, 0
      %979 = vmatprep.subr.mxu0 0.0
      %980 = vmatpush1.msra.mxu0 0.0
      %981 = vmatprep.subr.mxu0 0.0
      %982 = vmatpush1.msra.mxu0 0.0
      %983 = vmatprep.subr.mxu0 0.0
      %984 = vmatpush1.msra.mxu0 0.0
      %985 = vmatprep.subr.mxu0 0.0
      %986 = vmatpush1.msra.mxu0 0.0
      %987 = vmatprep.subr.mxu0 0.0
      %988 = vmatpush1.msra.mxu0 0.0
      %989 = vmatprep.subr.mxu0 0.0
      %990 = vmatpush1.msra.mxu0 0.0
      %991 = vmatprep.subr.mxu0 0.0
      %992 = vmatpush1.msra.mxu0 0.0
      %993 = vmatprep.subr.mxu0 0.0
      %994 = vmatpush1.msra.mxu0 0.0
      %995 = vmatprep.subr.mxu0 0.0
      %996 = vmatpush1.msra.mxu0 0.0
      %997 = vmatprep.subr.mxu0 0.0
      %998 = vmatpush1.msra.mxu0 0.0
      %999 = vmatprep.subr.mxu0 0.0
      %1000 = vmatpush1.msra.mxu0 0.0
      %1001 = vmatprep.subr.mxu0 0.0
      %1002 = vmatpush1.msra.mxu0 0.0
      %1003 = vmatprep.subr.mxu0 0.0
      %1004 = vmatpush1.msra.mxu0 %v968
      %1005 = vmatprep.subr.mxu0 0.0
      %1006 = vmatpush1.msra.mxu0 %v967
      %1007 = vmatprep.subr.mxu0 0.0
      %1008 = vmatpush1.msra.mxu0 %v966
      %1009 = vmatprep.subr.mxu0 0.0
      %1010 = vmatpush1.msra.mxu0 %v965
      %1011 = vmatprep.subr.mxu0 0.0
      %1012 = vmatpush2.msra.mxu0 0.0
      %1013 = vmatprep.subr.mxu0 0.0
      %1014 = vmatpush2.msra.mxu0 0.0
      %1015 = vmatprep.subr.mxu0 0.0
      %1016 = vmatpush2.msra.mxu0 0.0
      %1017 = vmatprep.subr.mxu0 0.0
      %1018 = vmatpush2.msra.mxu0 0.0
      %1019 = vmatprep.subr.mxu0 0.0
      %1020 = vmatpush2.msra.mxu0 0.0
      %1021 = vmatprep.subr.mxu0 0.0
      %1022 = vmatpush2.msra.mxu0 0.0
      %1023 = vmatprep.subr.mxu0 0.0
      %1024 = vmatpush2.msra.mxu0 0.0
      %1025 = vmatprep.subr.mxu0 0.0
      %1026 = vmatpush2.msra.mxu0 0.0
      %1027 = vmatprep.subr.mxu0 0.0
      %1028 = vmatpush2.msra.mxu0 0.0
      %1029 = vmatprep.subr.mxu0 0.0
      %1030 = vmatpush2.msra.mxu0 0.0
      %1031 = vmatprep.subr.mxu0 0.0
      %1032 = vmatpush2.msra.mxu0 0.0
      %1033 = vmatprep.subr.mxu0 0.0
      %1034 = vmatpush2.msra.mxu0 0.0
      %1035 = vmatprep.subr.mxu0 0.0
      %1036 = vmatpush2.msra.mxu0 0.0
      %1037 = vmatprep.subr.mxu0 0.0
      %1038 = vmatpush2.msra.mxu0 0.0
      %1039 = vmatprep.subr.mxu0 0.0
      %1040 = vmatpush2.msra.mxu0 0.0
      %1041 = vmatprep.subr.mxu0 0.0
      %1042 = vmatpush2.msra.mxu0 0.0
      %1043 = vmatprep.mubr.f32.mxu0 0.0
      %1044 = vmatmul.mubr.f32.gmra.mxu0 %v977
      %v1045 = vpop.f32.mrf.mxu0
      %v1046 = vadd.f32 %v974, %v1045
      %v1047 = vpop.f32.mrf.mxu0
      %1048 = vdwg.mxu0
      %v1049 = vstv %s31
      %vm1050 = vcmp.ge.s32.totalorder %v1049, 0
      %vm1051 = vcmp.ge.s32.totalorder %v1049, 1
      %vm1052 = vcmp.ge.s32.totalorder %v1049, 2
      %v1053 = vld [vmem:[#allocation3] sm:$0x3]
      %v1054 = vld [vmem:[#allocation3 + $0x2] sm:$0x3]
      %v1055 = vld [vmem:[#allocation3 + $0x4] sm:$0x3]
      %v1056 = vld [vmem:[#allocation4] sm:$0x3]
      %v1057 = vld [vmem:[#allocation4 + $0x2] sm:$0x3]
      %v1058 = vld [vmem:[#allocation4 + $0x4] sm:$0x3]
      %v1059 = vsel %vm1050, 1, 0
      %v1060 = vsel %vm1051, 1, 0
      %v1061 = vsel %vm1052, 1, 0
      %vm1062 = vcmp.eq.s32.totalorder %v1059, 1
      %vm1063 = vcmp.eq.s32.totalorder %v1060, 1
      %vm1064 = vcmp.eq.s32.totalorder %v1061, 1
      %v1065 = vsel %vm1062, %v1056, 0.0
      %v1066 = vsel %vm1063, %v1057, 0.0
      %v1067 = vsel %vm1064, %v1058, 0.0
      %1071 = vrot.lane.b32.xlu0 %v1053, 32
      %v1072 = vpop.permute.xlu0 %1071
      %1073 = vrot.lane.b32.xlu0 %v1054, 32
      %v1074 = vpop.permute.xlu0 %1073
      %1075 = vrot.lane.b32.xlu0 %v1055, 32
      %v1076 = vpop.permute.xlu0 %1075
      %v1080 = vmul.f32 %v600, %v1072
      %v1081 = vmul.f32 %v600, %v1074
      %v1082 = vmul.f32 %v600, %v1076
      %1086 = vrot.lane.b32.xlu0 %v1080, 96
      %v1087 = vpop.permute.xlu0 %1086
      %1088 = vrot.lane.b32.xlu0 %v1081, 96
      %v1089 = vpop.permute.xlu0 %1088
      %1090 = vrot.lane.b32.xlu0 %v1082, 96
      %v1091 = vpop.permute.xlu0 %1090
      %v1095 = vsel %vm700, %v1087, 0.0
      %1096 = vadd.xlane.f32.xlu0 %v1095
      %v1097 = vpop.xlane.xlu0 %1096
      %v1098 = vsel %vm700, %v1089, 0.0
      %1099 = vadd.xlane.f32.xlu0 %v1098
      %v1100 = vpop.xlane.xlu0 %1099
      %v1101 = vsel %vm700, %v1091, 0.0
      %1102 = vadd.xlane.f32.xlu0 %v1101
      %v1103 = vpop.xlane.xlu0 %1102
      %v1104 = vmul.f32 %v1097, 0.25
      %v1105 = vmul.f32 %v1100, 0.25
      %v1106 = vmul.f32 %v1103, 0.25
      %v1107 = vsel %vm1050, %v1104, -1e+30
      %v1108 = vsel %vm1051, %v1105, -1e+30
      %v1109 = vsel %vm1052, %v1106, -1e+30
      %vm1110 = vcmask 1041408
      %v1111 = vsel %vm1110, %v1107, -inf
      %v1112 = vsel %vm1110, %v1108, -inf
      %v1113 = vsel %vm1110, %v1109, -inf
      %v1114 = vmax.f32 %v1111, %v1112
      %v1115 = vmax.f32 %v1114, %v1113
      %v1116 = vsub.f32 %v1107, %v1115
      %v1117 = vsub.f32 %v1108, %v1115
      %v1118 = vsub.f32 %v1109, %v1115
      %v1119 = vmul.f32 %v1116, 1.442695
      %v1120 = vpow.pop %v1119
      %v1121 = vmul.f32 %v1117, 1.442695
      %v1122 = vpow.pop %v1121
      %v1123 = vmul.f32 %v1118, 1.442695
      %v1124 = vpow.pop %v1123
      %v1125 = vsel %vm1110, %v1120, 0.0
      %v1126 = vsel %vm1110, %v1122, 0.0
      %v1127 = vadd.f32 %v1125, %v1126
      %v1128 = vsel %vm1110, %v1124, 0.0
      %v1129 = vadd.f32 %v1127, %v1128
      %v1130 = vrcp.pop %v1129
      %v1131 = vmul.f32 %v1120, %v1130
      %v1132 = vmul.f32 %v1122, %v1130
      %v1133 = vmul.f32 %v1124, %v1130
      %v1134 = vmul.f32 %v1131, %v1065
      %v1135 = vmul.f32 %v1132, %v1066
      %v1136 = vmul.f32 %v1133, %v1067
      %v1137 = vsel %vm700, %v1134, 0.0
      %v1138 = vsel %vm700, %v1135, 0.0
      %v1139 = vadd.f32 %v1137, %v1138
      %v1140 = vsel %vm700, %v1136, 0.0
      %v1141 = vadd.f32 %v1139, %v1140
      %1142 = vrot.lane.b32.xlu0 %v1080, 80
      %v1143 = vpop.permute.xlu0 %1142
      %1144 = vrot.lane.b32.xlu0 %v1081, 80
      %v1145 = vpop.permute.xlu0 %1144
      %1146 = vrot.lane.b32.xlu0 %v1082, 80
      %v1147 = vpop.permute.xlu0 %1146
      %v1151 = vsel %vm700, %v1143, 0.0
      %1152 = vadd.xlane.f32.xlu0 %v1151
      %v1153 = vpop.xlane.xlu0 %1152
      %v1154 = vsel %vm700, %v1145, 0.0
      %1155 = vadd.xlane.f32.xlu0 %v1154
      %v1156 = vpop.xlane.xlu0 %1155
      %v1157 = vsel %vm700, %v1147, 0.0
      %1158 = vadd.xlane.f32.xlu0 %v1157
      %v1159 = vpop.xlane.xlu0 %1158
      %v1160 = vmul.f32 %v1153, 0.25
      %v1161 = vmul.f32 %v1156, 0.25
      %v1162 = vmul.f32 %v1159, 0.25
      %v1163 = vsel %vm1050, %v1160, -1e+30
      %v1164 = vsel %vm1051, %v1161, -1e+30
      %v1165 = vsel %vm1052, %v1162, -1e+30
      %v1166 = vsel %vm1110, %v1163, -inf
      %v1167 = vsel %vm1110, %v1164, -inf
      %v1168 = vsel %vm1110, %v1165, -inf
      %v1169 = vmax.f32 %v1166, %v1167
      %v1170 = vmax.f32 %v1169, %v1168
      %v1171 = vsub.f32 %v1163, %v1170
      %v1172 = vsub.f32 %v1164, %v1170
      %v1173 = vsub.f32 %v1165, %v1170
      %v1174 = vmul.f32 %v1171, 1.442695
      %v1175 = vpow.pop %v1174
      %v1176 = vmul.f32 %v1172, 1.442695
      %v1177 = vpow.pop %v1176
      %v1178 = vmul.f32 %v1173, 1.442695
      %v1179 = vpow.pop %v1178
      %v1180 = vsel %vm1110, %v1175, 0.0
      %v1181 = vsel %vm1110, %v1177, 0.0
      %v1182 = vadd.f32 %v1180, %v1181
      %v1183 = vsel %vm1110, %v1179, 0.0
      %v1184 = vadd.f32 %v1182, %v1183
      %v1185 = vrcp.pop %v1184
      %v1186 = vmul.f32 %v1175, %v1185
      %v1187 = vmul.f32 %v1177, %v1185
      %v1188 = vmul.f32 %v1179, %v1185
      %v1189 = vmul.f32 %v1186, %v1065
      %v1190 = vmul.f32 %v1187, %v1066
      %v1191 = vmul.f32 %v1188, %v1067
      %vm1192 = vcmask 255104
      %v1193 = vsel %vm1192, %v1189, 0.0
      %v1194 = vsel %vm1192, %v1190, 0.0
      %v1195 = vadd.f32 %v1193, %v1194
      %v1196 = vsel %vm1192, %v1191, 0.0
      %v1197 = vadd.f32 %v1195, %v1196
      %v1198 = vsel %vm620, %v1141, %v1197
      %v1199 = vld [vmem:[%s7] sm:$0xff]
      %v1200 = vld [vmem:[%s7 + $0x8] sm:$0xff]
      %v1201 = vld [vmem:[%s7 + $0x10] sm:$0xff]
      %v1202 = vld [vmem:[%s7 + $0x18] sm:$0xff]
      %v1203 = vld [vmem:[%s8] sm:$0x1]
      %v1205 = vlaneseq
      %v1206 = vshrl.u32 %v1205, 7
      %v1207 = vsub.s32 0, %v1206
      %v1208 = vrot.slane %v1203, %v1207
      %v1211 = vsel %vm529, %v1198, 0
      %1213 = vmatprep.subr.mxu0 0.0
      %1214 = vmatpush1.msra.mxu0 0.0
      %1215 = vmatprep.subr.mxu0 0.0
      %1216 = vmatpush1.msra.mxu0 0.0
      %1217 = vmatprep.subr.mxu0 0.0
      %1218 = vmatpush1.msra.mxu0 0.0
      %1219 = vmatprep.subr.mxu0 0.0
      %1220 = vmatpush1.msra.mxu0 0.0
      %1221 = vmatprep.subr.mxu0 0.0
      %1222 = vmatpush1.msra.mxu0 0.0
      %1223 = vmatprep.subr.mxu0 0.0
      %1224 = vmatpush1.msra.mxu0 0.0
      %1225 = vmatprep.subr.mxu0 0.0
      %1226 = vmatpush1.msra.mxu0 0.0
      %1227 = vmatprep.subr.mxu0 0.0
      %1228 = vmatpush1.msra.mxu0 0.0
      %1229 = vmatprep.subr.mxu0 0.0
      %1230 = vmatpush1.msra.mxu0 0.0
      %1231 = vmatprep.subr.mxu0 0.0
      %1232 = vmatpush1.msra.mxu0 0.0
      %1233 = vmatprep.subr.mxu0 0.0
      %1234 = vmatpush1.msra.mxu0 0.0
      %1235 = vmatprep.subr.mxu0 0.0
      %1236 = vmatpush1.msra.mxu0 0.0
      %1237 = vmatprep.subr.mxu0 0.0
      %1238 = vmatpush1.msra.mxu0 %v1202
      %1239 = vmatprep.subr.mxu0 0.0
      %1240 = vmatpush1.msra.mxu0 %v1201
      %1241 = vmatprep.subr.mxu0 0.0
      %1242 = vmatpush1.msra.mxu0 %v1200
      %1243 = vmatprep.subr.mxu0 0.0
      %1244 = vmatpush1.msra.mxu0 %v1199
      %1245 = vmatprep.subr.mxu0 0.0
      %1246 = vmatpush2.msra.mxu0 0.0
      %1247 = vmatprep.subr.mxu0 0.0
      %1248 = vmatpush2.msra.mxu0 0.0
      %1249 = vmatprep.subr.mxu0 0.0
      %1250 = vmatpush2.msra.mxu0 0.0
      %1251 = vmatprep.subr.mxu0 0.0
      %1252 = vmatpush2.msra.mxu0 0.0
      %1253 = vmatprep.subr.mxu0 0.0
      %1254 = vmatpush2.msra.mxu0 0.0
      %1255 = vmatprep.subr.mxu0 0.0
      %1256 = vmatpush2.msra.mxu0 0.0
      %1257 = vmatprep.subr.mxu0 0.0
      %1258 = vmatpush2.msra.mxu0 0.0
      %1259 = vmatprep.subr.mxu0 0.0
      %1260 = vmatpush2.msra.mxu0 0.0
      %1261 = vmatprep.subr.mxu0 0.0
      %1262 = vmatpush2.msra.mxu0 0.0
      %1263 = vmatprep.subr.mxu0 0.0
      %1264 = vmatpush2.msra.mxu0 0.0
      %1265 = vmatprep.subr.mxu0 0.0
      %1266 = vmatpush2.msra.mxu0 0.0
      %1267 = vmatprep.subr.mxu0 0.0
      %1268 = vmatpush2.msra.mxu0 0.0
      %1269 = vmatprep.subr.mxu0 0.0
      %1270 = vmatpush2.msra.mxu0 0.0
      %1271 = vmatprep.subr.mxu0 0.0
      %1272 = vmatpush2.msra.mxu0 0.0
      %1273 = vmatprep.subr.mxu0 0.0
      %1274 = vmatpush2.msra.mxu0 0.0
      %1275 = vmatprep.subr.mxu0 0.0
      %1276 = vmatpush2.msra.mxu0 0.0
      %1277 = vmatprep.mubr.f32.mxu0 0.0
      %1278 = vmatmul.mubr.f32.gmra.mxu0 %v1211
      %v1279 = vpop.f32.mrf.mxu0
      %v1280 = vadd.f32 %v1208, %v1279
      %v1281 = vpop.f32.mrf.mxu0
      %1282 = vdwg.mxu0
      %v1283 = vld [vmem:[%s9] sm:$0xff]
      %v1284 = vld [vmem:[%s9 + $0x8] sm:$0xff]
      %v1285 = vld [vmem:[%s9 + $0x10] sm:$0xff]
      %v1286 = vld [vmem:[%s9 + $0x18] sm:$0xff]
      %s1287 = scalar_lea.vmem %s9, 32
      %v1288 = vld [vmem:[%s1287] sm:$0xff]
      %v1289 = vld [vmem:[%s1287 + $0x8] sm:$0xff]
      %v1290 = vld [vmem:[%s1287 + $0x10] sm:$0xff]
      %v1291 = vld [vmem:[%s1287 + $0x18] sm:$0xff]
      %v1293 = vsel %vm529, %v1046, 0
      %1295 = vmatprep.subr.mxu0 0.0
      %1296 = vmatpush1.msra.mxu0 0.0
      %1297 = vmatprep.subr.mxu0 0.0
      %1298 = vmatpush1.msra.mxu0 0.0
      %1299 = vmatprep.subr.mxu0 0.0
      %1300 = vmatpush1.msra.mxu0 0.0
      %1301 = vmatprep.subr.mxu0 0.0
      %1302 = vmatpush1.msra.mxu0 0.0
      %1303 = vmatprep.subr.mxu0 0.0
      %1304 = vmatpush1.msra.mxu0 0.0
      %1305 = vmatprep.subr.mxu0 0.0
      %1306 = vmatpush1.msra.mxu0 0.0
      %1307 = vmatprep.subr.mxu0 0.0
      %1308 = vmatpush1.msra.mxu0 0.0
      %1309 = vmatprep.subr.mxu0 0.0
      %1310 = vmatpush1.msra.mxu0 0.0
      %1311 = vmatprep.subr.mxu0 0.0
      %1312 = vmatpush1.msra.mxu0 0.0
      %1313 = vmatprep.subr.mxu0 0.0
      %1314 = vmatpush1.msra.mxu0 0.0
      %1315 = vmatprep.subr.mxu0 0.0
      %1316 = vmatpush1.msra.mxu0 0.0
      %1317 = vmatprep.subr.mxu0 0.0
      %1318 = vmatpush1.msra.mxu0 0.0
      %1319 = vmatprep.subr.mxu0 0.0
      %1320 = vmatpush1.msra.mxu0 %v1291
      %1321 = vmatprep.subr.mxu0 0.0
      %1322 = vmatpush1.msra.mxu0 %v1290
      %1323 = vmatprep.subr.mxu0 0.0
      %1324 = vmatpush1.msra.mxu0 %v1289
      %1325 = vmatprep.subr.mxu0 0.0
      %1326 = vmatpush1.msra.mxu0 %v1288
      %1327 = vmatprep.subr.mxu0 0.0
      %1328 = vmatpush2.msra.mxu0 0.0
      %1329 = vmatprep.subr.mxu0 0.0
      %1330 = vmatpush2.msra.mxu0 0.0
      %1331 = vmatprep.subr.mxu0 0.0
      %1332 = vmatpush2.msra.mxu0 0.0
      %1333 = vmatprep.subr.mxu0 0.0
      %1334 = vmatpush2.msra.mxu0 0.0
      %1335 = vmatprep.subr.mxu0 0.0
      %1336 = vmatpush2.msra.mxu0 0.0
      %1337 = vmatprep.subr.mxu0 0.0
      %1338 = vmatpush2.msra.mxu0 0.0
      %1339 = vmatprep.subr.mxu0 0.0
      %1340 = vmatpush2.msra.mxu0 0.0
      %1341 = vmatprep.subr.mxu0 0.0
      %1342 = vmatpush2.msra.mxu0 0.0
      %1343 = vmatprep.subr.mxu0 0.0
      %1344 = vmatpush2.msra.mxu0 0.0
      %1345 = vmatprep.subr.mxu0 0.0
      %1346 = vmatpush2.msra.mxu0 0.0
      %1347 = vmatprep.subr.mxu0 0.0
      %1348 = vmatpush2.msra.mxu0 0.0
      %1349 = vmatprep.subr.mxu0 0.0
      %1350 = vmatpush2.msra.mxu0 0.0
      %1351 = vmatprep.subr.mxu0 0.0
      %1352 = vmatpush2.msra.mxu0 0.0
      %1353 = vmatprep.subr.mxu0 0.0
      %1354 = vmatpush2.msra.mxu0 0.0
      %1355 = vmatprep.subr.mxu0 0.0
      %1356 = vmatpush2.msra.mxu0 0.0
      %1357 = vmatprep.subr.mxu0 0.0
      %1358 = vmatpush2.msra.mxu0 0.0
      %1359 = vmatprep.mubr.f32.mxu0 0.0
      %1360 = vmatmul.mubr.f32.gmra.mxu0 %v1293
      %v1361 = vpop.f32.mrf.mxu0
      %v1362 = vadd.f32 0.0, %v1361
      %v1363 = vpop.f32.mrf.mxu0
      %1364 = vdwg.mxu0
      %1365 = vmatprep.subr.mxu0 0.0
      %1366 = vmatpush1.msra.mxu0 0.0
      %1367 = vmatprep.subr.mxu0 0.0
      %1368 = vmatpush1.msra.mxu0 0.0
      %1369 = vmatprep.subr.mxu0 0.0
      %1370 = vmatpush1.msra.mxu0 0.0
      %1371 = vmatprep.subr.mxu0 0.0
      %1372 = vmatpush1.msra.mxu0 0.0
      %1373 = vmatprep.subr.mxu0 0.0
      %1374 = vmatpush1.msra.mxu0 0.0
      %1375 = vmatprep.subr.mxu0 0.0
      %1376 = vmatpush1.msra.mxu0 0.0
      %1377 = vmatprep.subr.mxu0 0.0
      %1378 = vmatpush1.msra.mxu0 0.0
      %1379 = vmatprep.subr.mxu0 0.0
      %1380 = vmatpush1.msra.mxu0 0.0
      %1381 = vmatprep.subr.mxu0 0.0
      %1382 = vmatpush1.msra.mxu0 0.0
      %1383 = vmatprep.subr.mxu0 0.0
      %1384 = vmatpush1.msra.mxu0 0.0
      %1385 = vmatprep.subr.mxu0 0.0
      %1386 = vmatpush1.msra.mxu0 0.0
      %1387 = vmatprep.subr.mxu0 0.0
      %1388 = vmatpush1.msra.mxu0 0.0
      %1389 = vmatprep.subr.mxu0 0.0
      %1390 = vmatpush1.msra.mxu0 %v1286
      %1391 = vmatprep.subr.mxu0 0.0
      %1392 = vmatpush1.msra.mxu0 %v1285
      %1393 = vmatprep.subr.mxu0 0.0
      %1394 = vmatpush1.msra.mxu0 %v1284
      %1395 = vmatprep.subr.mxu0 0.0
      %1396 = vmatpush1.msra.mxu0 %v1283
      %1397 = vmatprep.subr.mxu0 0.0
      %1398 = vmatpush2.msra.mxu0 0.0
      %1399 = vmatprep.subr.mxu0 0.0
      %1400 = vmatpush2.msra.mxu0 0.0
      %1401 = vmatprep.subr.mxu0 0.0
      %1402 = vmatpush2.msra.mxu0 0.0
      %1403 = vmatprep.subr.mxu0 0.0
      %1404 = vmatpush2.msra.mxu0 0.0
      %1405 = vmatprep.subr.mxu0 0.0
      %1406 = vmatpush2.msra.mxu0 0.0
      %1407 = vmatprep.subr.mxu0 0.0
      %1408 = vmatpush2.msra.mxu0 0.0
      %1409 = vmatprep.subr.mxu0 0.0
      %1410 = vmatpush2.msra.mxu0 0.0
      %1411 = vmatprep.subr.mxu0 0.0
      %1412 = vmatpush2.msra.mxu0 0.0
      %1413 = vmatprep.subr.mxu0 0.0
      %1414 = vmatpush2.msra.mxu0 0.0
      %1415 = vmatprep.subr.mxu0 0.0
      %1416 = vmatpush2.msra.mxu0 0.0
      %1417 = vmatprep.subr.mxu0 0.0
      %1418 = vmatpush2.msra.mxu0 0.0
      %1419 = vmatprep.subr.mxu0 0.0
      %1420 = vmatpush2.msra.mxu0 0.0
      %1421 = vmatprep.subr.mxu0 0.0
      %1422 = vmatpush2.msra.mxu0 0.0
      %1423 = vmatprep.subr.mxu0 0.0
      %1424 = vmatpush2.msra.mxu0 0.0
      %1425 = vmatprep.subr.mxu0 0.0
      %1426 = vmatpush2.msra.mxu0 0.0
      %1427 = vmatprep.subr.mxu0 0.0
      %1428 = vmatpush2.msra.mxu0 0.0
      %1429 = vmatprep.mubr.f32.mxu0 0.0
      %1430 = vmatmul.mubr.f32.gmra.mxu0 %v531
      %v1431 = vpop.f32.mrf.mxu0
      %v1432 = vadd.f32 %v1362, %v1431
      %v1433 = vpop.f32.mrf.mxu0
      %1434 = vdwg.mxu0
      %s1435 = scalar_lea.vmem %s9, 64
      %v1436 = vld [vmem:[%s1435] sm:$0xff]
      %v1437 = vld [vmem:[%s1435 + $0x8] sm:$0xff]
      %v1438 = vld [vmem:[%s1435 + $0x10] sm:$0xff]
      %v1439 = vld [vmem:[%s1435 + $0x18] sm:$0xff]
      %v1441 = vsel %vm529, %v1280, 0
      %1443 = vmatprep.subr.mxu0 0.0
      %1444 = vmatpush1.msra.mxu0 0.0
      %1445 = vmatprep.subr.mxu0 0.0
      %1446 = vmatpush1.msra.mxu0 0.0
      %1447 = vmatprep.subr.mxu0 0.0
      %1448 = vmatpush1.msra.mxu0 0.0
      %1449 = vmatprep.subr.mxu0 0.0
      %1450 = vmatpush1.msra.mxu0 0.0
      %1451 = vmatprep.subr.mxu0 0.0
      %1452 = vmatpush1.msra.mxu0 0.0
      %1453 = vmatprep.subr.mxu0 0.0
      %1454 = vmatpush1.msra.mxu0 0.0
      %1455 = vmatprep.subr.mxu0 0.0
      %1456 = vmatpush1.msra.mxu0 0.0
      %1457 = vmatprep.subr.mxu0 0.0
      %1458 = vmatpush1.msra.mxu0 0.0
      %1459 = vmatprep.subr.mxu0 0.0
      %1460 = vmatpush1.msra.mxu0 0.0
      %1461 = vmatprep.subr.mxu0 0.0
      %1462 = vmatpush1.msra.mxu0 0.0
      %1463 = vmatprep.subr.mxu0 0.0
      %1464 = vmatpush1.msra.mxu0 0.0
      %1465 = vmatprep.subr.mxu0 0.0
      %1466 = vmatpush1.msra.mxu0 0.0
      %1467 = vmatprep.subr.mxu0 0.0
      %1468 = vmatpush1.msra.mxu0 %v1439
      %1469 = vmatprep.subr.mxu0 0.0
      %1470 = vmatpush1.msra.mxu0 %v1438
      %1471 = vmatprep.subr.mxu0 0.0
      %1472 = vmatpush1.msra.mxu0 %v1437
      %1473 = vmatprep.subr.mxu0 0.0
      %1474 = vmatpush1.msra.mxu0 %v1436
      %1475 = vmatprep.subr.mxu0 0.0
      %1476 = vmatpush2.msra.mxu0 0.0
      %1477 = vmatprep.subr.mxu0 0.0
      %1478 = vmatpush2.msra.mxu0 0.0
      %1479 = vmatprep.subr.mxu0 0.0
      %1480 = vmatpush2.msra.mxu0 0.0
      %1481 = vmatprep.subr.mxu0 0.0
      %1482 = vmatpush2.msra.mxu0 0.0
      %1483 = vmatprep.subr.mxu0 0.0
      %1484 = vmatpush2.msra.mxu0 0.0
      %1485 = vmatprep.subr.mxu0 0.0
      %1486 = vmatpush2.msra.mxu0 0.0
      %1487 = vmatprep.subr.mxu0 0.0
      %1488 = vmatpush2.msra.mxu0 0.0
      %1489 = vmatprep.subr.mxu0 0.0
      %1490 = vmatpush2.msra.mxu0 0.0
      %1491 = vmatprep.subr.mxu0 0.0
      %1492 = vmatpush2.msra.mxu0 0.0
      %1493 = vmatprep.subr.mxu0 0.0
      %1494 = vmatpush2.msra.mxu0 0.0
      %1495 = vmatprep.subr.mxu0 0.0
      %1496 = vmatpush2.msra.mxu0 0.0
      %1497 = vmatprep.subr.mxu0 0.0
      %1498 = vmatpush2.msra.mxu0 0.0
      %1499 = vmatprep.subr.mxu0 0.0
      %1500 = vmatpush2.msra.mxu0 0.0
      %1501 = vmatprep.subr.mxu0 0.0
      %1502 = vmatpush2.msra.mxu0 0.0
      %1503 = vmatprep.subr.mxu0 0.0
      %1504 = vmatpush2.msra.mxu0 0.0
      %1505 = vmatprep.subr.mxu0 0.0
      %1506 = vmatpush2.msra.mxu0 0.0
      %1507 = vmatprep.mubr.f32.mxu0 0.0
      %1508 = vmatmul.mubr.f32.gmra.mxu0 %v1441
      %v1509 = vpop.f32.mrf.mxu0
      %v1510 = vadd.f32 0.0, %v1509
      %v1511 = vpop.f32.mrf.mxu0
      %1512 = vdwg.mxu0
      %v1513 = vadd.f32 %v1432, %v1510
      %v1514 = vld [vmem:[%s10] sm:$0x1]
      %v1516 = vlaneseq
      %v1517 = vshrl.u32 %v1516, 7
      %v1518 = vsub.s32 0, %v1517
      %v1519 = vrot.slane %v1514, %v1518
      %v1521 = vadd.f32 %v1513, %v1519
      %vm1522 = vcmask 517120
      %v1523 = vsel %vm1522, %v1521, 0.0
      %1524 = vadd.xlane.f32.xlu0 %v1523
      %v1525 = vpop.xlane.xlu0 %1524
      %v1526 = vrcp.pop 64.0
      %v1527 = vmul.f32 %v1525, %v1526
      %v1528 = vsub.f32 %v1521, %v1527
      %v1529 = vmul.f32 %v1528, %v1528
      %v1530 = vsel %vm1522, %v1529, 0.0
      %1531 = vadd.xlane.f32.xlu0 %v1530
      %v1532 = vpop.xlane.xlu0 %1531
      %v1533 = vmul.f32 %v1532, %v1526
      %v1534 = vadd.f32 %v1533, 1e-05
      %v1535 = vrsqrt.pop %v1534
      %v1536 = vmul.f32 %v1528, %v1535
      %v1537 = vld [vmem:[%s11] sm:$0x1]
      %v1539 = vlaneseq
      %v1540 = vshrl.u32 %v1539, 7
      %v1541 = vsub.s32 0, %v1540
      %v1542 = vrot.slane %v1537, %v1541
      %v1544 = vmul.f32 %v1536, %v1542
      %v1545 = vld [vmem:[%s12] sm:$0x1]
      %v1547 = vlaneseq
      %v1548 = vshrl.u32 %v1547, 7
      %v1549 = vsub.s32 0, %v1548
      %v1550 = vrot.slane %v1545, %v1549
      %v1552 = vadd.f32 %v1544, %v1550
      %v1553 = vmul.f32 %v1552, 0.5
      %v1554 = vmul.f32 %v1552, 0.70710677
      %v1555 = vand.u32 2147483647, %v1554
      %v1556 = vmul.f32 %v1555, 0.3275911
      %v1557 = vadd.f32 %v1556, 1.0
      %v1558 = vrcp.pop %v1557
      %v1559 = vmul.f32 1.0, %v1558
      %v1560 = vmul.f32 %v1559, 1.0614054
      %v1561 = vadd.f32 %v1560, -1.4531521
      %v1562 = vmul.f32 %v1561, %v1559
      %v1563 = vadd.f32 %v1562, 1.4214138
      %v1564 = vmul.f32 %v1563, %v1559
      %v1565 = vadd.f32 %v1564, -0.28449672
      %v1566 = vmul.f32 %v1565, %v1559
      %v1567 = vadd.f32 %v1566, 0.2548296
      %v1568 = vmul.f32 %v1567, %v1559
      %v1569 = vsub.f32 0.0, %v1555
      %v1570 = vmul.f32 %v1569, %v1555
      %v1571 = vmul.f32 %v1570, 1.442695
      %v1572 = vpow.pop %v1571
      %v1573 = vmul.f32 %v1568, %v1572
      %v1574 = vsub.f32 1.0, %v1573
      %vm1575 = vcmp.ge.f32.partialorder %v1554, 0.0
      %v1576 = vsub.f32 0.0, %v1574
      %v1577 = vsel %vm1575, %v1574, %v1576
      %v1578 = vadd.f32 %v1577, 1.0
      %v1579 = vmul.f32 %v1553, %v1578
      %v1580 = vld [vmem:[%s13] sm:$0xff]
      %v1581 = vld [vmem:[%s13 + $0x8] sm:$0xff]
      %v1582 = vld [vmem:[%s13 + $0x10] sm:$0xff]
      %v1583 = vld [vmem:[%s13 + $0x18] sm:$0xff]
      %v1584 = vld [vmem:[%s13 + $0x20] sm:$0xff]
      %v1585 = vld [vmem:[%s13 + $0x28] sm:$0xff]
      %v1586 = vld [vmem:[%s13 + $0x30] sm:$0xff]
      %v1587 = vld [vmem:[%s13 + $0x38] sm:$0xff]
      %v1588 = vld [vmem:[%s14] sm:$0x1]
      %v1590 = vlaneseq
      %v1591 = vshrl.u32 %v1590, 7
      %v1592 = vsub.s32 0, %v1591
      %v1593 = vrot.slane %v1588, %v1592
      %vm1595 = vcmask 523264
      %v1597 = vsel %vm1595, %v1579, 0
      %1599 = vmatprep.subr.mxu0 0.0
      %1600 = vmatpush1.msra.mxu0 0.0
      %1601 = vmatprep.subr.mxu0 0.0
      %1602 = vmatpush1.msra.mxu0 0.0
      %1603 = vmatprep.subr.mxu0 0.0
      %1604 = vmatpush1.msra.mxu0 0.0
      %1605 = vmatprep.subr.mxu0 0.0
      %1606 = vmatpush1.msra.mxu0 0.0
      %1607 = vmatprep.subr.mxu0 0.0
      %1608 = vmatpush1.msra.mxu0 0.0
      %1609 = vmatprep.subr.mxu0 0.0
      %1610 = vmatpush1.msra.mxu0 0.0
      %1611 = vmatprep.subr.mxu0 0.0
      %1612 = vmatpush1.msra.mxu0 0.0
      %1613 = vmatprep.subr.mxu0 0.0
      %1614 = vmatpush1.msra.mxu0 0.0
      %1615 = vmatprep.subr.mxu0 0.0
      %1616 = vmatpush1.msra.mxu0 %v1587
      %1617 = vmatprep.subr.mxu0 0.0
      %1618 = vmatpush1.msra.mxu0 %v1586
      %1619 = vmatprep.subr.mxu0 0.0
      %1620 = vmatpush1.msra.mxu0 %v1585
      %1621 = vmatprep.subr.mxu0 0.0
      %1622 = vmatpush1.msra.mxu0 %v1584
      %1623 = vmatprep.subr.mxu0 0.0
      %1624 = vmatpush1.msra.mxu0 %v1583
      %1625 = vmatprep.subr.mxu0 0.0
      %1626 = vmatpush1.msra.mxu0 %v1582
      %1627 = vmatprep.subr.mxu0 0.0
      %1628 = vmatpush1.msra.mxu0 %v1581
      %1629 = vmatprep.subr.mxu0 0.0
      %1630 = vmatpush1.msra.mxu0 %v1580
      %1631 = vmatprep.subr.mxu0 0.0
      %1632 = vmatpush2.msra.mxu0 0.0
      %1633 = vmatprep.subr.mxu0 0.0
      %1634 = vmatpush2.msra.mxu0 0.0
      %1635 = vmatprep.subr.mxu0 0.0
      %1636 = vmatpush2.msra.mxu0 0.0
      %1637 = vmatprep.subr.mxu0 0.0
      %1638 = vmatpush2.msra.mxu0 0.0
      %1639 = vmatprep.subr.mxu0 0.0
      %1640 = vmatpush2.msra.mxu0 0.0
      %1641 = vmatprep.subr.mxu0 0.0
      %1642 = vmatpush2.msra.mxu0 0.0
      %1643 = vmatprep.subr.mxu0 0.0
      %1644 = vmatpush2.msra.mxu0 0.0
      %1645 = vmatprep.subr.mxu0 0.0
      %1646 = vmatpush2.msra.mxu0 0.0
      %1647 = vmatprep.subr.mxu0 0.0
      %1648 = vmatpush2.msra.mxu0 0.0
      %1649 = vmatprep.subr.mxu0 0.0
      %1650 = vmatpush2.msra.mxu0 0.0
      %1651 = vmatprep.subr.mxu0 0.0
      %1652 = vmatpush2.msra.mxu0 0.0
      %1653 = vmatprep.subr.mxu0 0.0
      %1654 = vmatpush2.msra.mxu0 0.0
      %1655 = vmatprep.subr.mxu0 0.0
      %1656 = vmatpush2.msra.mxu0 0.0
      %1657 = vmatprep.subr.mxu0 0.0
      %1658 = vmatpush2.msra.mxu0 0.0
      %1659 = vmatprep.subr.mxu0 0.0
      %1660 = vmatpush2.msra.mxu0 0.0
      %1661 = vmatprep.subr.mxu0 0.0
      %1662 = vmatpush2.msra.mxu0 0.0
      %1663 = vmatprep.mubr.f32.mxu0 0.0
      %1664 = vmatmul.mubr.f32.gmra.mxu0 %v1597
      %v1665 = vpop.f32.mrf.mxu0
      %v1666 = vadd.f32 %v1593, %v1665
      %v1667 = vpop.f32.mrf.mxu0
      %1668 = vdwg.mxu0
      %1669 = vst.msk [vmem:[%s509] sm:$0x3] %vm609, %v1666
      %1670 = vst.msk [vmem:[#allocation2] sm:$0x3] %vm609, %v1666
      %p1671 = scmp.lt.s32.totalorder %s31, 2
      %s1672 = scalar_select %p1671, %s31, 2
      %p1673 = scmp.lt.s32.totalorder %s30, 0
      %s1674 = scalar_select %p1673, %s30, 0
      %s1675 = sadd.s32 %s1674, %s1672
      %s1676 = smul.addr %s1675, 2
      %s1677 = scalar_lea.vmem %s15, %s1676
      // Predicated region
      $region85: #{_run_prover.1} parent=79 // pred_check
        %p1678 = pneg %p378
      $region86: #{_run_prover.1} parent=79 // pred_check_branch
        %1680 = sbr.rel (%p1678) target = $region88
      $region87: #{_run_prover.1} parent=79 // pred_region
        _
      $region88: #{_run_prover.1} parent=79 // pred_fallthru
        _
    $region80: #{_run_prover.1} parent=5 // pred_fallthru
      _
    %p1681 = scmp.le.s32.totalorder 2, %s21
    // Predicated region
    $region89: #{_run_prover.1} parent=5 // pred_check
      %p1682 = pneg %p1681
    $region90: #{_run_prover.1} parent=5 // pred_check_branch
      %1684 = sbr.rel (%p1682) target = $region92
    $region91: #{_run_prover.1} parent=5 // pred_region
      %s1685 = ssub.s32 %s21, 2
      // Predicated region
      $region93: #{_run_prover.1} parent=91 // pred_check
        %p1686 = pneg %p384
      $region94: #{_run_prover.1} parent=91 // pred_check_branch
        %1688 = sbr.rel (%p1686) target = $region96
      $region95: #{_run_prover.1} parent=91 // pred_region
        %p1689 = scmp.lt.s32.totalorder %s33, 2
        %s1690 = scalar_select %p1689, %s33, 2
        %p1691 = scmp.lt.s32.totalorder %s32, 0
        %s1692 = scalar_select %p1691, %s32, 0
        %s1693 = sadd.s32 %s1692, %s1690
        %s1694 = smul.addr %s1693, 2
        %s1695 = scalar_lea.vmem %s15, %s1694
      $region96: #{_run_prover.1} parent=91 // pred_fallthru
        _
    $region92: #{_run_prover.1} parent=5 // pred_fallthru
      _
  $region6: #{_run_prover.1} parent=0 // loop_footer
    %s25 = sadd.s32 1, %s21
  $region7: #{_run_prover.1} parent=0 // loop_footer_branch
    %20 = sbr.rel target = $region3
  $region8: #{_run_prover.1} parent=0 // loop_exit
    _

</llo_original>
